<compile_context>
chip_gen: v5e
topology: v5e:2x2
jax: 0.10.0
libtpu: 0.0.40
codegen_flags: <defaults>
</compile_context>

<pallas_src>
import math

import jax
import jax.numpy as jnp
from jax import lax
from jax.experimental import pallas as pl
from jax.experimental.pallas import tpu as pltpu


# ----------------------------------------------------------------------------
# Fused Pallas kernel: conv1(3x3) + BN + LeakyReLU + MaxPool2x2
#                      -> conv2(1x1) + BN + LeakyReLU + GlobalAvgPool -> Linear
# ----------------------------------------------------------------------------
def _deep_image_kernel(a1_ref, w1_ref, g1_ref, b1_ref,
                       w2_ref, g2_ref, b2_ref,
                       pool_ref, lw_ref, lb_ref, o_ref):
    # ---- Layer 1: Conv3x3 (im2col matmul, bf16 operands, f32 accumulation) ----
    # a1: (4*mp, 27) bf16, rows ordered (q, b, hp, wp) where q indexes the 2x2
    # maxpool window position.  Conv bias omitted: canceled by batch-stat BN.
    z1 = jnp.dot(a1_ref[...], w1_ref[...],
                 preferred_element_type=jnp.float32)            # (4*mp, 64) f32
    n1 = float(a1_ref.shape[0])                                 # = B*H*W
    s1 = jnp.sum(z1, axis=0, keepdims=True)
    ss1 = jnp.sum(z1 * z1, axis=0, keepdims=True)
    mu1 = s1 * (1.0 / n1)
    var1 = jnp.maximum(ss1 * (1.0 / n1) - mu1 * mu1, 0.0)       # biased variance
    scale1 = g1_ref[...] * lax.rsqrt(var1 + 1e-5)
    shift1 = b1_ref[...] - mu1 * scale1
    y1 = z1 * scale1 + shift1
    y1 = jnp.where(y1 >= 0.0, y1, 0.1 * y1)                     # LeakyReLU(0.1)

    # MaxPool2d(2,2): the 4 window positions are contiguous row groups.
    mp = a1_ref.shape[0] // 4
    pooled = jnp.maximum(
        jnp.maximum(y1[0 * mp:1 * mp, :], y1[1 * mp:2 * mp, :]),
        jnp.maximum(y1[2 * mp:3 * mp, :], y1[3 * mp:4 * mp, :]),
    )                                                           # (mp, 64)

    # ---- Layer 2: Conv1x1 matmul + BN + LeakyReLU ----
    z2 = jnp.dot(pooled.astype(jnp.bfloat16), w2_ref[...],
                 preferred_element_type=jnp.float32)            # (mp, 128) f32
    n2 = float(mp)                                              # = B*Hp*Wp
    s2 = jnp.sum(z2, axis=0, keepdims=True)
    ss2 = jnp.sum(z2 * z2, axis=0, keepdims=True)
    mu2 = s2 * (1.0 / n2)
    var2 = jnp.maximum(ss2 * (1.0 / n2) - mu2 * mu2, 0.0)
    scale2 = g2_ref[...] * lax.rsqrt(var2 + 1e-5)
    shift2 = b2_ref[...] - mu2 * scale2
    y2 = z2 * scale2 + shift2
    y2 = jnp.where(y2 >= 0.0, y2, 0.1 * y2)                     # (mp, 128)

    # ---- AdaptiveAvgPool2d((1,1)) as a (B, mp) selector matmul ----
    avg = jnp.dot(pool_ref[...], y2,
                  preferred_element_type=jnp.float32)           # (B, 128)

    # ---- Linear(128, 1): elementwise mul + lane reduction (avoids a 1-lane MXU op)
    o_ref[...] = jnp.sum(avg * lw_ref[...], axis=1, keepdims=True) + lb_ref[...]


# ----------------------------------------------------------------------------
# Parameters (PyTorch layouts)
# ----------------------------------------------------------------------------
def init_params(key):
    ks = jax.random.split(key, 6)
    p = {}
    p["conv1_w"] = jax.random.normal(ks[0], (64, 3, 3, 3), jnp.float32) * (
        1.0 / math.sqrt(3 * 3 * 3))                 # OIHW
    p["conv1_b"] = jax.random.normal(ks[1], (64,), jnp.float32) * 0.01
    p["bn1_g"] = jnp.ones((64,), jnp.float32)
    p["bn1_b"] = jnp.zeros((64,), jnp.float32)
    p["conv2_w"] = jax.random.normal(ks[2], (128, 64, 1, 1), jnp.float32) * (
        1.0 / math.sqrt(64))
    p["conv2_b"] = jax.random.normal(ks[3], (128,), jnp.float32) * 0.01
    p["bn2_g"] = jnp.ones((128,), jnp.float32)
    p["bn2_b"] = jnp.zeros((128,), jnp.float32)
    p["lin_w"] = jax.random.normal(ks[4], (1, 128), jnp.float32) * (
        1.0 / math.sqrt(128))                       # (out_features, in_features)
    p["lin_b"] = jax.random.normal(ks[5], (1,), jnp.float32) * 0.01
    return p


# ----------------------------------------------------------------------------
# Wrapper: layout prep (NCHW -> NHWC, im2col with q-major pool ordering) + call
# ----------------------------------------------------------------------------
def deep_image_forward(x_nchw, p):
    x = jnp.transpose(x_nchw, (0, 2, 3, 1)).astype(jnp.float32)   # (B,H,W,Cin)
    B, H, W, Cin = x.shape
    # Guard: PyTorch MaxPool2d(2,2) floors odd dims; this fused path assumes even.
    assert H % 2 == 0 and W % 2 == 0, "fused MaxPool path requires even H, W"
    Hp, Wp = H // 2, W // 2
    mp = B * Hp * Wp
    K1 = 9 * Cin

    # The single fused kernel keeps everything resident in VMEM; guard the size.
    vmem_est = (4 * mp * max(K1, 128) * 2            # bf16 patches (lane-padded)
                + 4 * mp * 64 * 4 * 2                # z1 / y1
                + mp * 128 * 4 * 2)                  # z2 / y2
    assert vmem_est < 16 * 1024 * 1024, (
        "shape too large for the single fused-kernel path; tile M + two-pass BN")

    # im2col for conv1 (3x3, pad=1), rows pre-sorted q-major so that the 2x2
    # maxpool windows become 4 contiguous row groups inside the kernel.
    xp = jnp.pad(x, ((0, 0), (1, 1), (1, 1), (0, 0)))
    cols = [xp[:, ky:ky + H, kx:kx + W, :] for ky in range(3) for kx in range(3)]
    patches = jnp.concatenate(cols, axis=-1)                      # (B,H,W,9*Cin)
    patches = patches.reshape(B, Hp, 2, Wp, 2, K1)
    patches = jnp.transpose(patches, (2, 4, 0, 1, 3, 5))          # (2,2,B,Hp,Wp,K1)
    a1 = patches.reshape(4 * mp, K1).astype(jnp.bfloat16)

    # Conv weights as matmul matrices (biases dropped: exactly canceled by BN).
    w1 = jnp.transpose(p["conv1_w"], (2, 3, 1, 0)).reshape(K1, 64).astype(jnp.bfloat16)
    w2 = p["conv2_w"].reshape(128, 64).T.astype(jnp.bfloat16)     # (64, 128)

    # Block-diagonal selector implementing AdaptiveAvgPool2d((1,1)) per batch.
    pool_mat = jnp.repeat(jnp.eye(B, dtype=jnp.float32), Hp * Wp, axis=1) / float(Hp * Wp)

    out = pl.pallas_call(
        _deep_image_kernel,
        out_shape=jax.ShapeDtypeStruct((B, 1), jnp.float32),
        grid=(1,),
        in_specs=[
            pl.BlockSpec((4 * mp, K1), lambda i: (0, 0)),   # a1
            pl.BlockSpec((K1, 64), lambda i: (0, 0)),       # w1
            pl.BlockSpec((1, 64), lambda i: (0, 0)),        # bn1 gamma
            pl.BlockSpec((1, 64), lambda i: (0, 0)),        # bn1 beta
            pl.BlockSpec((64, 128), lambda i: (0, 0)),      # w2
            pl.BlockSpec((1, 128), lambda i: (0, 0)),       # bn2 gamma
            pl.BlockSpec((1, 128), lambda i: (0, 0)),       # bn2 beta
            pl.BlockSpec((B, mp), lambda i: (0, 0)),        # avg-pool selector
            pl.BlockSpec((1, 128), lambda i: (0, 0)),       # linear weight
            pl.BlockSpec((1, 1), lambda i: (0, 0)),         # linear bias
        ],
        out_specs=pl.BlockSpec((B, 1), lambda i: (0, 0)),
        compiler_params=pltpu.CompilerParams(
            dimension_semantics=("arbitrary",)),
    )(a1, w1,
      p["bn1_g"].reshape(1, 64), p["bn1_b"].reshape(1, 64),
      w2,
      p["bn2_g"].reshape(1, 128), p["bn2_b"].reshape(1, 128),
      pool_mat,
      p["lin_w"].reshape(1, 128), p["lin_b"].reshape(1, 1))
    return out


# ----------------------------------------------------------------------------
# Pure-JAX f32 reference (keeps the conv biases; BN must cancel them exactly)
# ----------------------------------------------------------------------------
def reference_forward(x_nchw, p):
    hp = lax.Precision.HIGHEST

    def bn_lrelu(y, g, b):
        mu = jnp.mean(y, axis=(0, 2, 3), keepdims=True)
        var = jnp.mean((y - mu) ** 2, axis=(0, 2, 3), keepdims=True)
        y = (y - mu) / jnp.sqrt(var + 1e-5) * g[None, :, None, None] + b[None, :, None, None]
        return jnp.where(y >= 0, y, 0.1 * y)

    y = lax.conv_general_dilated(
        x_nchw, p["conv1_w"], (1, 1), ((1, 1), (1, 1)),
        dimension_numbers=("NCHW", "OIHW", "NCHW"), precision=hp,
    ) + p["conv1_b"][None, :, None, None]
    y = bn_lrelu(y, p["bn1_g"], p["bn1_b"])
    B, C, H, W = y.shape
    y = y.reshape(B, C, H // 2, 2, W // 2, 2).max(axis=(3, 5))
    y = lax.conv_general_dilated(
        y, p["conv2_w"], (1, 1), ((0, 0), (0, 0)),
        dimension_numbers=("NCHW", "OIHW", "NCHW"), precision=hp,
    ) + p["conv2_b"][None, :, None, None]
    y = bn_lrelu(y, p["bn2_g"], p["bn2_b"])
    y = jnp.mean(y, axis=(2, 3))
    return jnp.dot(y, p["lin_w"].T, precision=hp) + p["lin_b"]


# ----------------------------------------------------------------------------
if __name__ == "__main__":
    key = jax.random.PRNGKey(0)
    k_x, k_p = jax.random.split(key)

    # Small input consistent with the module: NCHW, 3 input channels.
    x = jax.random.normal(k_x, (2, 3, 16, 16), jnp.float32)
    params = init_params(k_p)

    out = jax.jit(deep_image_forward)(x, params)
    out = jax.block_until_ready(out)
    assert out.shape == (2, 1), out.shape
    assert bool(jnp.all(jnp.isfinite(out)))

    ref = jax.block_until_ready(reference_forward(x, params))
    # bf16 MXU operands vs f32 HIGHEST reference: keep a 2e-2 tolerance.
    assert jnp.allclose(out, ref, atol=2e-2, rtol=2e-2), (out, ref)

    print("KERNEL_OK")
</pallas_src>

<mosaic_0001>
module attributes {stable_mosaic.version = 11 : i64} {
  func.func @_deep_image_kernel(%arg0: i32, %arg1: memref<512x27xbf16, #tpu.memory_space<vmem>>, %arg2: memref<27x64xbf16, #tpu.memory_space<vmem>>, %arg3: memref<1x64xf32, #tpu.memory_space<vmem>>, %arg4: memref<1x64xf32, #tpu.memory_space<vmem>>, %arg5: memref<64x128xbf16, #tpu.memory_space<vmem>>, %arg6: memref<1x128xf32, #tpu.memory_space<vmem>>, %arg7: memref<1x128xf32, #tpu.memory_space<vmem>>, %arg8: memref<2x128xf32, #tpu.memory_space<vmem>>, %arg9: memref<1x128xf32, #tpu.memory_space<vmem>>, %arg10: memref<1x1xf32, #tpu.memory_space<vmem>>, %arg11: memref<2x1xf32, #tpu.memory_space<vmem>>) attributes {dimension_semantics = [#tpu.dimension_semantics<arbitrary>], iteration_bounds = array<i64: 1>, scalar_prefetch = 0 : i64, scratch_operands = 0 : i64, tpu.core_type = #tpu.core_type<tc>, window_params = [{pipeline_mode = #tpu.pipeline_mode<synchronous>, transform_indices = @transform_0, window_bounds = array<i64: 512, 27>}, {pipeline_mode = #tpu.pipeline_mode<synchronous>, transform_indices = @transform_1, window_bounds = array<i64: 27, 64>}, {pipeline_mode = #tpu.pipeline_mode<synchronous>, transform_indices = @transform_2, window_bounds = array<i64: 1, 64>}, {pipeline_mode = #tpu.pipeline_mode<synchronous>, transform_indices = @transform_3, window_bounds = array<i64: 1, 64>}, {pipeline_mode = #tpu.pipeline_mode<synchronous>, transform_indices = @transform_4, window_bounds = array<i64: 64, 128>}, {pipeline_mode = #tpu.pipeline_mode<synchronous>, transform_indices = @transform_5, window_bounds = array<i64: 1, 128>}, {pipeline_mode = #tpu.pipeline_mode<synchronous>, transform_indices = @transform_6, window_bounds = array<i64: 1, 128>}, {pipeline_mode = #tpu.pipeline_mode<synchronous>, transform_indices = @transform_7, window_bounds = array<i64: 2, 128>}, {pipeline_mode = #tpu.pipeline_mode<synchronous>, transform_indices = @transform_8, window_bounds = array<i64: 1, 128>}, {pipeline_mode = #tpu.pipeline_mode<synchronous>, transform_indices = @transform_9, window_bounds = array<i64: 1, 1>}, {pipeline_mode = #tpu.pipeline_mode<synchronous>, transform_indices = @transform_10, window_bounds = array<i64: 2, 1>}]} {
    %c0 = arith.constant 0 : index
    %c0_0 = arith.constant 0 : index
    %0 = vector.load %arg1[%c0, %c0_0] : memref<512x27xbf16, #tpu.memory_space<vmem>>, vector<512x27xbf16>
    %c0_1 = arith.constant 0 : index
    %c0_2 = arith.constant 0 : index
    %1 = vector.load %arg2[%c0_1, %c0_2] : memref<27x64xbf16, #tpu.memory_space<vmem>>, vector<27x64xbf16>
    %cst = arith.constant dense<0.000000e+00> : vector<512x64xf32>
    %2 = tpu.matmul %0, %1, %cst {dimension_numbers = #tpu.dot_dimension_numbers<[1], [0], [0], [1], [0, 0, 1, 1], [], []>} : vector<512x27xbf16>, vector<27x64xbf16>, vector<512x64xf32> -> vector<512x64xf32>
    %cst_3 = arith.constant dense<0.000000e+00> : vector<64xf32>
    %3 = vector.multi_reduction <add>, %2, %cst_3 [0] : vector<512x64xf32> to vector<64xf32>
    %4 = vector.shape_cast %3 : vector<64xf32> to vector<1x64xf32>
    %5 = arith.mulf %2, %2 : vector<512x64xf32>
    %cst_4 = arith.constant dense<0.000000e+00> : vector<64xf32>
    %6 = vector.multi_reduction <add>, %5, %cst_4 [0] : vector<512x64xf32> to vector<64xf32>
    %7 = vector.shape_cast %6 : vector<64xf32> to vector<1x64xf32>
    %cst_5 = arith.constant 0.001953125 : f32
    %8 = vector.broadcast %cst_5 : f32 to vector<1x64xf32>
    %9 = arith.mulf %4, %8 : vector<1x64xf32>
    %cst_6 = arith.constant 0.001953125 : f32
    %10 = vector.broadcast %cst_6 : f32 to vector<1x64xf32>
    %11 = arith.mulf %7, %10 : vector<1x64xf32>
    %12 = arith.mulf %9, %9 : vector<1x64xf32>
    %13 = arith.subf %11, %12 : vector<1x64xf32>
    %cst_7 = arith.constant 0.000000e+00 : f32
    %14 = vector.broadcast %cst_7 : f32 to vector<1x64xf32>
    %15 = arith.maximumf %13, %14 : vector<1x64xf32>
    %c0_8 = arith.constant 0 : index
    %c0_9 = arith.constant 0 : index
    %16 = vector.load %arg3[%c0_8, %c0_9] : memref<1x64xf32, #tpu.memory_space<vmem>>, vector<1x64xf32>
    %cst_10 = arith.constant 9.99999974E-6 : f32
    %17 = vector.broadcast %cst_10 : f32 to vector<1x64xf32>
    %18 = arith.addf %15, %17 : vector<1x64xf32>
    %19 = math.rsqrt %18 : vector<1x64xf32>
    %20 = arith.mulf %16, %19 : vector<1x64xf32>
    %c0_11 = arith.constant 0 : index
    %c0_12 = arith.constant 0 : index
    %21 = vector.load %arg4[%c0_11, %c0_12] : memref<1x64xf32, #tpu.memory_space<vmem>>, vector<1x64xf32>
    %22 = arith.mulf %9, %20 : vector<1x64xf32>
    %23 = arith.subf %21, %22 : vector<1x64xf32>
    %24 = vector.broadcast %20 : vector<1x64xf32> to vector<512x64xf32>
    %25 = arith.mulf %2, %24 : vector<512x64xf32>
    %26 = vector.broadcast %23 : vector<1x64xf32> to vector<512x64xf32>
    %27 = arith.addf %25, %26 : vector<512x64xf32>
    %cst_13 = arith.constant 0.000000e+00 : f32
    %28 = vector.broadcast %cst_13 : f32 to vector<512x64xf32>
    %29 = arith.cmpf oge, %27, %28 : vector<512x64xf32>
    %cst_14 = arith.constant 1.000000e-01 : f32
    %30 = vector.broadcast %cst_14 : f32 to vector<512x64xf32>
    %31 = arith.mulf %30, %27 : vector<512x64xf32>
    %32 = arith.select %29, %27, %31 : vector<512x64xi1>, vector<512x64xf32>
    %33 = vector.extract_strided_slice %32 {offsets = [0, 0], sizes = [128, 64], strides = [1, 1]} : vector<512x64xf32> to vector<128x64xf32>
    %34 = vector.extract_strided_slice %32 {offsets = [128, 0], sizes = [128, 64], strides = [1, 1]} : vector<512x64xf32> to vector<128x64xf32>
    %35 = arith.maximumf %33, %34 : vector<128x64xf32>
    %36 = vector.extract_strided_slice %32 {offsets = [256, 0], sizes = [128, 64], strides = [1, 1]} : vector<512x64xf32> to vector<128x64xf32>
    %37 = vector.extract_strided_slice %32 {offsets = [384, 0], sizes = [128, 64], strides = [1, 1]} : vector<512x64xf32> to vector<128x64xf32>
    %38 = arith.maximumf %36, %37 : vector<128x64xf32>
    %39 = arith.maximumf %35, %38 : vector<128x64xf32>
    %40 = arith.truncf %39 : vector<128x64xf32> to vector<128x64xbf16>
    %c0_15 = arith.constant 0 : index
    %c0_16 = arith.constant 0 : index
    %41 = vector.load %arg5[%c0_15, %c0_16] : memref<64x128xbf16, #tpu.memory_space<vmem>>, vector<64x128xbf16>
    %cst_17 = arith.constant dense<0.000000e+00> : vector<128x128xf32>
    %42 = tpu.matmul %40, %41, %cst_17 {dimension_numbers = #tpu.dot_dimension_numbers<[1], [0], [0], [1], [0, 0, 1, 1], [], []>} : vector<128x64xbf16>, vector<64x128xbf16>, vector<128x128xf32> -> vector<128x128xf32>
    %cst_18 = arith.constant dense<0.000000e+00> : vector<128xf32>
    %43 = vector.multi_reduction <add>, %42, %cst_18 [0] : vector<128x128xf32> to vector<128xf32>
    %44 = vector.shape_cast %43 : vector<128xf32> to vector<1x128xf32>
    %45 = arith.mulf %42, %42 : vector<128x128xf32>
    %cst_19 = arith.constant dense<0.000000e+00> : vector<128xf32>
    %46 = vector.multi_reduction <add>, %45, %cst_19 [0] : vector<128x128xf32> to vector<128xf32>
    %47 = vector.shape_cast %46 : vector<128xf32> to vector<1x128xf32>
    %cst_20 = arith.constant 7.812500e-03 : f32
    %48 = vector.broadcast %cst_20 : f32 to vector<1x128xf32>
    %49 = arith.mulf %44, %48 : vector<1x128xf32>
    %cst_21 = arith.constant 7.812500e-03 : f32
    %50 = vector.broadcast %cst_21 : f32 to vector<1x128xf32>
    %51 = arith.mulf %47, %50 : vector<1x128xf32>
    %52 = arith.mulf %49, %49 : vector<1x128xf32>
    %53 = arith.subf %51, %52 : vector<1x128xf32>
    %cst_22 = arith.constant 0.000000e+00 : f32
    %54 = vector.broadcast %cst_22 : f32 to vector<1x128xf32>
    %55 = arith.maximumf %53, %54 : vector<1x128xf32>
    %c0_23 = arith.constant 0 : index
    %c0_24 = arith.constant 0 : index
    %56 = vector.load %arg6[%c0_23, %c0_24] : memref<1x128xf32, #tpu.memory_space<vmem>>, vector<1x128xf32>
    %cst_25 = arith.constant 9.99999974E-6 : f32
    %57 = vector.broadcast %cst_25 : f32 to vector<1x128xf32>
    %58 = arith.addf %55, %57 : vector<1x128xf32>
    %59 = math.rsqrt %58 : vector<1x128xf32>
    %60 = arith.mulf %56, %59 : vector<1x128xf32>
    %c0_26 = arith.constant 0 : index
    %c0_27 = arith.constant 0 : index
    %61 = vector.load %arg7[%c0_26, %c0_27] : memref<1x128xf32, #tpu.memory_space<vmem>>, vector<1x128xf32>
    %62 = arith.mulf %49, %60 : vector<1x128xf32>
    %63 = arith.subf %61, %62 : vector<1x128xf32>
    %64 = vector.broadcast %60 : vector<1x128xf32> to vector<128x128xf32>
    %65 = arith.mulf %42, %64 : vector<128x128xf32>
    %66 = vector.broadcast %63 : vector<1x128xf32> to vector<128x128xf32>
    %67 = arith.addf %65, %66 : vector<128x128xf32>
    %cst_28 = arith.constant 0.000000e+00 : f32
    %68 = vector.broadcast %cst_28 : f32 to vector<128x128xf32>
    %69 = arith.cmpf oge, %67, %68 : vector<128x128xf32>
    %cst_29 = arith.constant 1.000000e-01 : f32
    %70 = vector.broadcast %cst_29 : f32 to vector<128x128xf32>
    %71 = arith.mulf %70, %67 : vector<128x128xf32>
    %72 = arith.select %69, %67, %71 : vector<128x128xi1>, vector<128x128xf32>
    %c0_30 = arith.constant 0 : index
    %c0_31 = arith.constant 0 : index
    %73 = vector.load %arg8[%c0_30, %c0_31] : memref<2x128xf32, #tpu.memory_space<vmem>>, vector<2x128xf32>
    %cst_32 = arith.constant dense<0.000000e+00> : vector<2x128xf32>
    %74 = tpu.matmul %73, %72, %cst_32 {dimension_numbers = #tpu.dot_dimension_numbers<[1], [0], [0], [1], [0, 0, 1, 1], [], []>} : vector<2x128xf32>, vector<128x128xf32>, vector<2x128xf32> -> vector<2x128xf32>
    %c0_33 = arith.constant 0 : index
    %c0_34 = arith.constant 0 : index
    %75 = vector.load %arg9[%c0_33, %c0_34] : memref<1x128xf32, #tpu.memory_space<vmem>>, vector<1x128xf32>
    %76 = vector.broadcast %75 : vector<1x128xf32> to vector<2x128xf32>
    %77 = arith.mulf %74, %76 : vector<2x128xf32>
    %cst_35 = arith.constant dense<0.000000e+00> : vector<2xf32>
    %78 = vector.multi_reduction <add>, %77, %cst_35 [1] : vector<2x128xf32> to vector<2xf32>
    %79 = vector.shape_cast %78 : vector<2xf32> to vector<2x1xf32>
    %c0_36 = arith.constant 0 : index
    %c0_37 = arith.constant 0 : index
    %80 = vector.load %arg10[%c0_36, %c0_37] : memref<1x1xf32, #tpu.memory_space<vmem>>, vector<1x1xf32>
    %81 = vector.broadcast %80 : vector<1x1xf32> to vector<2x1xf32>
    %82 = arith.addf %79, %81 : vector<2x1xf32>
    %c0_38 = arith.constant 0 : index
    %c0_39 = arith.constant 0 : index
    %83 = vector.load %arg11[%c0_38, %c0_39] : memref<2x1xf32, #tpu.memory_space<vmem>>, vector<2x1xf32>
    tpu.vector_store %arg11[%c0_38, %c0_39], %82 {strides = array<i32>} : memref<2x1xf32, #tpu.memory_space<vmem>>, vector<2x1xf32>,
    return
  }
  func.func @transform_0(%arg0: i32) -> (i32, i32) {
    %c0_i32 = arith.constant 0 : i32
    %c0_i32_0 = arith.constant 0 : i32
    %c0_i32_1 = arith.constant 0 : i32
    return %c0_i32, %c0_i32_0 : i32, i32
  }
  func.func @transform_1(%arg0: i32) -> (i32, i32) {
    %c0_i32 = arith.constant 0 : i32
    %c0_i32_0 = arith.constant 0 : i32
    %c0_i32_1 = arith.constant 0 : i32
    return %c0_i32, %c0_i32_0 : i32, i32
  }
  func.func @transform_2(%arg0: i32) -> (i32, i32) {
    %c0_i32 = arith.constant 0 : i32
    %c0_i32_0 = arith.constant 0 : i32
    %c0_i32_1 = arith.constant 0 : i32
    return %c0_i32, %c0_i32_0 : i32, i32
  }
  func.func @transform_3(%arg0: i32) -> (i32, i32) {
    %c0_i32 = arith.constant 0 : i32
    %c0_i32_0 = arith.constant 0 : i32
    %c0_i32_1 = arith.constant 0 : i32
    return %c0_i32, %c0_i32_0 : i32, i32
  }
  func.func @transform_4(%arg0: i32) -> (i32, i32) {
    %c0_i32 = arith.constant 0 : i32
    %c0_i32_0 = arith.constant 0 : i32
    %c0_i32_1 = arith.constant 0 : i32
    return %c0_i32, %c0_i32_0 : i32, i32
  }
  func.func @transform_5(%arg0: i32) -> (i32, i32) {
    %c0_i32 = arith.constant 0 : i32
    %c0_i32_0 = arith.constant 0 : i32
    %c0_i32_1 = arith.constant 0 : i32
    return %c0_i32, %c0_i32_0 : i32, i32
  }
  func.func @transform_6(%arg0: i32) -> (i32, i32) {
    %c0_i32 = arith.constant 0 : i32
    %c0_i32_0 = arith.constant 0 : i32
    %c0_i32_1 = arith.constant 0 : i32
    return %c0_i32, %c0_i32_0 : i32, i32
  }
  func.func @transform_7(%arg0: i32) -> (i32, i32) {
    %c0_i32 = arith.constant 0 : i32
    %c0_i32_0 = arith.constant 0 : i32
    %c0_i32_1 = arith.constant 0 : i32
    return %c0_i32, %c0_i32_0 : i32, i32
  }
  func.func @transform_8(%arg0: i32) -> (i32, i32) {
    %c0_i32 = arith.constant 0 : i32
    %c0_i32_0 = arith.constant 0 : i32
    %c0_i32_1 = arith.constant 0 : i32
    return %c0_i32, %c0_i32_0 : i32, i32
  }
  func.func @transform_9(%arg0: i32) -> (i32, i32) {
    %c0_i32 = arith.constant 0 : i32
    %c0_i32_0 = arith.constant 0 : i32
    %c0_i32_1 = arith.constant 0 : i32
    return %c0_i32, %c0_i32_0 : i32, i32
  }
  func.func @transform_10(%arg0: i32) -> (i32, i32) {
    %c0_i32 = arith.constant 0 : i32
    %c0_i32_0 = arith.constant 0 : i32
    %c0_i32_1 = arith.constant 0 : i32
    return %c0_i32, %c0_i32_0 : i32, i32
  }
}

</mosaic_0001>

<llo_original>
// kernel: deep_image_forward.1
$region0: #{deep_image_forward.1}
  #allocation0 [shape = 'u32[]', space=smem, size = 0x4, offset = 0x4, fixed_abs, tag = 'smem constant byte address 0x4 - core index']
  #allocation1 [shape = 'u32[72,128]{1,0:T(1,128)}', space=vmem, size = 0x9000, scoped, tag = 'internal scratch']
  #allocation2 [shape = 'f32[1,1]{1,0:T(1,128)S(1)}', space=vmem, size = 0x200, scoped, tag = 'scoped memory for deep_image_forward.1']
  %s0 = inlined_call_operand.vmem [shape: bf16[512,27], index: 0, kind: input, shape index: {}]
  %s1 = inlined_call_operand.vmem [shape: bf16[27,64], index: 1, kind: input, shape index: {}]
  %s2 = inlined_call_operand.vmem [shape: f32[1,64], index: 2, kind: input, shape index: {}]
  %s3 = inlined_call_operand.vmem [shape: f32[1,64], index: 3, kind: input, shape index: {}]
  %s4 = inlined_call_operand.vmem [shape: bf16[64,128], index: 4, kind: input, shape index: {}]
  %s5 = inlined_call_operand.vmem [shape: f32[1,128], index: 5, kind: input, shape index: {}]
  %s6 = inlined_call_operand.vmem [shape: f32[1,128], index: 6, kind: input, shape index: {}]
  %s7 = inlined_call_operand.vmem [shape: f32[2,128], index: 7, kind: input, shape index: {}]
  %s8 = inlined_call_operand.vmem [shape: f32[1,128], index: 8, kind: input, shape index: {}]
  %s9 = inlined_call_operand.<no memory space> [shape: f32[1,1], index: 9, kind: input, shape index: {}]
  %s10 = inlined_call_operand.vmem [shape: f32[2,1], index: 10, kind: output, shape index: {}]
  %s11 = sld [smem:[#allocation0]]
  $region50: #{deep_image_forward.1} parent=0
    _
  %s13 = ssub.s32 1, %s11
  %s14 = scalar_select 0, %s13, %s11
  %v15 = vstv %s9
  %16 = vst [vmem:[#allocation2] sm:$0x1] %v15
  // Predicated region
  $region2: #{deep_image_forward.1} parent=0 // pred_check
    _
  $region3: #{deep_image_forward.1} parent=0 // pred_check_branch
    %18 = sbr.rel (0) target = $region5
  $region4: #{deep_image_forward.1} parent=0 // pred_region
    _
  $region5: #{deep_image_forward.1} parent=0 // pred_fallthru
    _
  // Predicated region
  $region6: #{deep_image_forward.1} parent=0 // pred_check
    _
  $region7: #{deep_image_forward.1} parent=0 // pred_check_branch
    %20 = sbr.rel (0) target = $region9
  $region8: #{deep_image_forward.1} parent=0 // pred_region
    _
  $region9: #{deep_image_forward.1} parent=0 // pred_fallthru
    _
  // Predicated region
  $region10: #{deep_image_forward.1} parent=0 // pred_check
    _
  $region11: #{deep_image_forward.1} parent=0 // pred_check_branch
    %22 = sbr.rel (0) target = $region13
  $region12: #{deep_image_forward.1} parent=0 // pred_region
    _
  $region13: #{deep_image_forward.1} parent=0 // pred_fallthru
    _
  // Predicated region
  $region14: #{deep_image_forward.1} parent=0 // pred_check
    _
  $region15: #{deep_image_forward.1} parent=0 // pred_check_branch
    %24 = sbr.rel (0) target = $region17
  $region16: #{deep_image_forward.1} parent=0 // pred_region
    _
  $region17: #{deep_image_forward.1} parent=0 // pred_fallthru
    _
  // Predicated region
  $region18: #{deep_image_forward.1} parent=0 // pred_check
    _
  $region19: #{deep_image_forward.1} parent=0 // pred_check_branch
    %26 = sbr.rel (0) target = $region21
  $region20: #{deep_image_forward.1} parent=0 // pred_region
    _
  $region21: #{deep_image_forward.1} parent=0 // pred_fallthru
    _
  // Predicated region
  $region22: #{deep_image_forward.1} parent=0 // pred_check
    _
  $region23: #{deep_image_forward.1} parent=0 // pred_check_branch
    %28 = sbr.rel (0) target = $region25
  $region24: #{deep_image_forward.1} parent=0 // pred_region
    _
  $region25: #{deep_image_forward.1} parent=0 // pred_fallthru
    _
  // Predicated region
  $region26: #{deep_image_forward.1} parent=0 // pred_check
    _
  $region27: #{deep_image_forward.1} parent=0 // pred_check_branch
    %30 = sbr.rel (0) target = $region29
  $region28: #{deep_image_forward.1} parent=0 // pred_region
    _
  $region29: #{deep_image_forward.1} parent=0 // pred_fallthru
    _
  // Predicated region
  $region30: #{deep_image_forward.1} parent=0 // pred_check
    _
  $region31: #{deep_image_forward.1} parent=0 // pred_check_branch
    %32 = sbr.rel (0) target = $region33
  $region32: #{deep_image_forward.1} parent=0 // pred_region
    _
  $region33: #{deep_image_forward.1} parent=0 // pred_fallthru
    _
  // Predicated region
  $region34: #{deep_image_forward.1} parent=0 // pred_check
    _
  $region35: #{deep_image_forward.1} parent=0 // pred_check_branch
    %34 = sbr.rel (0) target = $region37
  $region36: #{deep_image_forward.1} parent=0 // pred_region
    _
  $region37: #{deep_image_forward.1} parent=0 // pred_fallthru
    _
  // Predicated region
  $region38: #{deep_image_forward.1} parent=0 // pred_check
    _
  $region39: #{deep_image_forward.1} parent=0 // pred_check_branch
    %36 = sbr.rel (0) target = $region41
  $region40: #{deep_image_forward.1} parent=0 // pred_region
    _
  $region41: #{deep_image_forward.1} parent=0 // pred_fallthru
    _
  %v38 = vld [vmem:[%s0] sm:$0xf]
  %v39 = vld [vmem:[%s0 + $0x4] sm:$0xf]
  %v40 = vld [vmem:[%s0 + $0x8] sm:$0xf]
  %v41 = vld [vmem:[%s0 + $0xc] sm:$0xf]
  %v42 = vld [vmem:[%s0 + $0x10] sm:$0xf]
  %v43 = vld [vmem:[%s0 + $0x14] sm:$0xf]
  %v44 = vld [vmem:[%s0 + $0x18] sm:$0xf]
  %v45 = vld [vmem:[%s0 + $0x1c] sm:$0xf]
  %v46 = vld [vmem:[%s0 + $0x20] sm:$0xf]
  %v47 = vld [vmem:[%s0 + $0x24] sm:$0xf]
  %v48 = vld [vmem:[%s0 + $0x28] sm:$0xf]
  %v49 = vld [vmem:[%s0 + $0x2c] sm:$0xf]
  %v50 = vld [vmem:[%s0 + $0x30] sm:$0xf]
  %v51 = vld [vmem:[%s0 + $0x34] sm:$0xf]
  %v52 = vld [vmem:[%s0 + $0x38] sm:$0xf]
  %v53 = vld [vmem:[%s0 + $0x3c] sm:$0xf]
  %v54 = vld [vmem:[%s0 + $0x40] sm:$0xf]
  %v55 = vld [vmem:[%s0 + $0x44] sm:$0xf]
  %v56 = vld [vmem:[%s0 + $0x48] sm:$0xf]
  %v57 = vld [vmem:[%s0 + $0x4c] sm:$0xf]
  %v58 = vld [vmem:[%s0 + $0x50] sm:$0xf]
  %v59 = vld [vmem:[%s0 + $0x54] sm:$0xf]
  %v60 = vld [vmem:[%s0 + $0x58] sm:$0xf]
  %v61 = vld [vmem:[%s0 + $0x5c] sm:$0xf]
  %v62 = vld [vmem:[%s0 + $0x60] sm:$0xf]
  %v63 = vld [vmem:[%s0 + $0x64] sm:$0xf]
  %v64 = vld [vmem:[%s0 + $0x68] sm:$0xf]
  %v65 = vld [vmem:[%s0 + $0x6c] sm:$0xf]
  %v66 = vld [vmem:[%s0 + $0x70] sm:$0xf]
  %v67 = vld [vmem:[%s0 + $0x74] sm:$0xf]
  %v68 = vld [vmem:[%s0 + $0x78] sm:$0xf]
  %v69 = vld [vmem:[%s0 + $0x7c] sm:$0xf]
  %v70 = vld [vmem:[%s0 + $0x80] sm:$0xf]
  %v71 = vld [vmem:[%s0 + $0x84] sm:$0xf]
  %v72 = vld [vmem:[%s0 + $0x88] sm:$0xf]
  %v73 = vld [vmem:[%s0 + $0x8c] sm:$0xf]
  %v74 = vld [vmem:[%s0 + $0x90] sm:$0xf]
  %v75 = vld [vmem:[%s0 + $0x94] sm:$0xf]
  %v76 = vld [vmem:[%s0 + $0x98] sm:$0xf]
  %v77 = vld [vmem:[%s0 + $0x9c] sm:$0xf]
  %v78 = vld [vmem:[%s0 + $0xa0] sm:$0xf]
  %v79 = vld [vmem:[%s0 + $0xa4] sm:$0xf]
  %v80 = vld [vmem:[%s0 + $0xa8] sm:$0xf]
  %v81 = vld [vmem:[%s0 + $0xac] sm:$0xf]
  %v82 = vld [vmem:[%s0 + $0xb0] sm:$0xf]
  %v83 = vld [vmem:[%s0 + $0xb4] sm:$0xf]
  %v84 = vld [vmem:[%s0 + $0xb8] sm:$0xf]
  %v85 = vld [vmem:[%s0 + $0xbc] sm:$0xf]
  %v86 = vld [vmem:[%s0 + $0xc0] sm:$0xf]
  %v87 = vld [vmem:[%s0 + $0xc4] sm:$0xf]
  %v88 = vld [vmem:[%s0 + $0xc8] sm:$0xf]
  %v89 = vld [vmem:[%s0 + $0xcc] sm:$0xf]
  %v90 = vld [vmem:[%s0 + $0xd0] sm:$0xf]
  %v91 = vld [vmem:[%s0 + $0xd4] sm:$0xf]
  %v92 = vld [vmem:[%s0 + $0xd8] sm:$0xf]
  %v93 = vld [vmem:[%s0 + $0xdc] sm:$0xf]
  %v94 = vld [vmem:[%s0 + $0xe0] sm:$0xf]
  %v95 = vld [vmem:[%s0 + $0xe4] sm:$0xf]
  %v96 = vld [vmem:[%s0 + $0xe8] sm:$0xf]
  %v97 = vld [vmem:[%s0 + $0xec] sm:$0xf]
  %v98 = vld [vmem:[%s0 + $0xf0] sm:$0xf]
  %v99 = vld [vmem:[%s0 + $0xf4] sm:$0xf]
  %v100 = vld [vmem:[%s0 + $0xf8] sm:$0xf]
  %v101 = vld [vmem:[%s0 + $0xfc] sm:$0xf]
  %v102 = vld [vmem:[%s1] sm:$0xf]
  %v103 = vld [vmem:[%s1 + $0x4] sm:$0xf]
  %v104 = vld [vmem:[%s1 + $0x8] sm:$0xf]
  %v105 = vld [vmem:[%s1 + $0xc] sm:$0x3]
  %v170 = vunpack.c.l.b16 %v38
  %v171 = vunpack.c.l.b16 %v39
  %v172 = vunpack.c.l.b16 %v40
  %v173 = vunpack.c.l.b16 %v41
  %v174 = vunpack.c.l.b16 %v42
  %v175 = vunpack.c.l.b16 %v43
  %v176 = vunpack.c.l.b16 %v44
  %v177 = vunpack.c.l.b16 %v45
  %v178 = vunpack.c.l.b16 %v46
  %v179 = vunpack.c.l.b16 %v47
  %v180 = vunpack.c.l.b16 %v48
  %v181 = vunpack.c.l.b16 %v49
  %v182 = vunpack.c.l.b16 %v50
  %v183 = vunpack.c.l.b16 %v51
  %v184 = vunpack.c.l.b16 %v52
  %v185 = vunpack.c.l.b16 %v53
  %v186 = vunpack.c.l.b16 %v54
  %v187 = vunpack.c.l.b16 %v55
  %v188 = vunpack.c.l.b16 %v56
  %v189 = vunpack.c.l.b16 %v57
  %v190 = vunpack.c.l.b16 %v58
  %v191 = vunpack.c.l.b16 %v59
  %v192 = vunpack.c.l.b16 %v60
  %v193 = vunpack.c.l.b16 %v61
  %v194 = vunpack.c.l.b16 %v62
  %v195 = vunpack.c.l.b16 %v63
  %v196 = vunpack.c.l.b16 %v64
  %v197 = vunpack.c.l.b16 %v65
  %v198 = vunpack.c.l.b16 %v66
  %v199 = vunpack.c.l.b16 %v67
  %v200 = vunpack.c.l.b16 %v68
  %v201 = vunpack.c.l.b16 %v69
  %v202 = vunpack.c.l.b16 %v70
  %v203 = vunpack.c.l.b16 %v71
  %v204 = vunpack.c.l.b16 %v72
  %v205 = vunpack.c.l.b16 %v73
  %v206 = vunpack.c.l.b16 %v74
  %v207 = vunpack.c.l.b16 %v75
  %v208 = vunpack.c.l.b16 %v76
  %v209 = vunpack.c.l.b16 %v77
  %v210 = vunpack.c.l.b16 %v78
  %v211 = vunpack.c.l.b16 %v79
  %v212 = vunpack.c.l.b16 %v80
  %v213 = vunpack.c.l.b16 %v81
  %v214 = vunpack.c.l.b16 %v82
  %v215 = vunpack.c.l.b16 %v83
  %v216 = vunpack.c.l.b16 %v84
  %v217 = vunpack.c.l.b16 %v85
  %v218 = vunpack.c.l.b16 %v86
  %v219 = vunpack.c.l.b16 %v87
  %v220 = vunpack.c.l.b16 %v88
  %v221 = vunpack.c.l.b16 %v89
  %v222 = vunpack.c.l.b16 %v90
  %v223 = vunpack.c.l.b16 %v91
  %v224 = vunpack.c.l.b16 %v92
  %v225 = vunpack.c.l.b16 %v93
  %v226 = vunpack.c.l.b16 %v94
  %v227 = vunpack.c.l.b16 %v95
  %v228 = vunpack.c.l.b16 %v96
  %v229 = vunpack.c.l.b16 %v97
  %v230 = vunpack.c.l.b16 %v98
  %v231 = vunpack.c.l.b16 %v99
  %v232 = vunpack.c.l.b16 %v100
  %v233 = vunpack.c.l.b16 %v101
  %v234 = vpack.c.b16 %v171, %v170
  %v235 = vpack.c.b16 %v173, %v172
  %v236 = vpack.c.b16 %v175, %v174
  %v237 = vpack.c.b16 %v177, %v176
  %v238 = vpack.c.b16 %v179, %v178
  %v239 = vpack.c.b16 %v181, %v180
  %v240 = vpack.c.b16 %v183, %v182
  %v241 = vpack.c.b16 %v185, %v184
  %v242 = vpack.c.b16 %v187, %v186
  %v243 = vpack.c.b16 %v189, %v188
  %v244 = vpack.c.b16 %v191, %v190
  %v245 = vpack.c.b16 %v193, %v192
  %v246 = vpack.c.b16 %v195, %v194
  %v247 = vpack.c.b16 %v197, %v196
  %v248 = vpack.c.b16 %v199, %v198
  %v249 = vpack.c.b16 %v201, %v200
  %v250 = vpack.c.b16 %v203, %v202
  %v251 = vpack.c.b16 %v205, %v204
  %v252 = vpack.c.b16 %v207, %v206
  %v253 = vpack.c.b16 %v209, %v208
  %v254 = vpack.c.b16 %v211, %v210
  %v255 = vpack.c.b16 %v213, %v212
  %v256 = vpack.c.b16 %v215, %v214
  %v257 = vpack.c.b16 %v217, %v216
  %v258 = vpack.c.b16 %v219, %v218
  %v259 = vpack.c.b16 %v221, %v220
  %v260 = vpack.c.b16 %v223, %v222
  %v261 = vpack.c.b16 %v225, %v224
  %v262 = vpack.c.b16 %v227, %v226
  %v263 = vpack.c.b16 %v229, %v228
  %v264 = vpack.c.b16 %v231, %v230
  %v265 = vpack.c.b16 %v233, %v232
  %v270 = vunpack.c.l.b16 %v102
  %v271 = vunpack.c.l.b16 %v103
  %v272 = vunpack.c.l.b16 %v104
  %v273 = vunpack.c.l.b16 %v105
  %v274 = vpack.c.b16 %v271, %v270
  %v275 = vpack.c.b16 %v273, %v272
  %vm277 = vcmask 220160
  %v279 = vsel %vm277, %v234, 0
  %v282 = vsel %vm277, %v235, 0
  %v285 = vsel %vm277, %v236, 0
  %v288 = vsel %vm277, %v237, 0
  %v291 = vsel %vm277, %v238, 0
  %v294 = vsel %vm277, %v239, 0
  %v297 = vsel %vm277, %v240, 0
  %v300 = vsel %vm277, %v241, 0
  %v303 = vsel %vm277, %v242, 0
  %v306 = vsel %vm277, %v243, 0
  %v309 = vsel %vm277, %v244, 0
  %v312 = vsel %vm277, %v245, 0
  %v315 = vsel %vm277, %v246, 0
  %v318 = vsel %vm277, %v247, 0
  %v321 = vsel %vm277, %v248, 0
  %v324 = vsel %vm277, %v249, 0
  %v327 = vsel %vm277, %v250, 0
  %v330 = vsel %vm277, %v251, 0
  %v333 = vsel %vm277, %v252, 0
  %v336 = vsel %vm277, %v253, 0
  %v339 = vsel %vm277, %v254, 0
  %v342 = vsel %vm277, %v255, 0
  %v345 = vsel %vm277, %v256, 0
  %v348 = vsel %vm277, %v257, 0
  %v351 = vsel %vm277, %v258, 0
  %v354 = vsel %vm277, %v259, 0
  %v357 = vsel %vm277, %v260, 0
  %v360 = vsel %vm277, %v261, 0
  %v363 = vsel %vm277, %v262, 0
  %v366 = vsel %vm277, %v263, 0
  %v369 = vsel %vm277, %v264, 0
  %v372 = vsel %vm277, %v265, 0
  %vm374 = vcmask 1044480
  %vm375 = vcmask 1045504
  %v376 = vsel %vm374, 4294967295, 65535
  %v377 = vsel %vm375, %v376, 0
  %v379 = vand.u32 %v275, %v377
  %381 = vmatpush.bf16.msra.mxu0 0
  %382 = vmatpush.bf16.msra.mxu0 0
  %383 = vmatpush.bf16.msra.mxu0 0
  %384 = vmatpush.bf16.msra.mxu0 0
  %385 = vmatpush.bf16.msra.mxu0 0
  %386 = vmatpush.bf16.msra.mxu0 0
  %387 = vmatpush.bf16.msra.mxu0 %v379
  %388 = vmatpush.bf16.msra.mxu0 %v274
  %389 = vmatmul.bf16.gmra.mxu0 %v279
  %v390 = vpop.f32.mrf.mxu0
  %v391 = vadd.f32 0.0, %v390
  %v392 = vpop.f32.mrf.mxu0
  %v393 = vadd.f32 0.0, %v392
  %394 = vmatmul.bf16.gmra.mxu0 %v282
  %v395 = vpop.f32.mrf.mxu0
  %v396 = vadd.f32 0.0, %v395
  %v397 = vpop.f32.mrf.mxu0
  %v398 = vadd.f32 0.0, %v397
  %399 = vmatmul.bf16.gmra.mxu0 %v285
  %v400 = vpop.f32.mrf.mxu0
  %v401 = vadd.f32 0.0, %v400
  %v402 = vpop.f32.mrf.mxu0
  %v403 = vadd.f32 0.0, %v402
  %404 = vmatmul.bf16.gmra.mxu0 %v288
  %v405 = vpop.f32.mrf.mxu0
  %v406 = vadd.f32 0.0, %v405
  %v407 = vpop.f32.mrf.mxu0
  %v408 = vadd.f32 0.0, %v407
  %409 = vmatmul.bf16.gmra.mxu0 %v291
  %v410 = vpop.f32.mrf.mxu0
  %v411 = vadd.f32 0.0, %v410
  %v412 = vpop.f32.mrf.mxu0
  %v413 = vadd.f32 0.0, %v412
  %414 = vmatmul.bf16.gmra.mxu0 %v294
  %v415 = vpop.f32.mrf.mxu0
  %v416 = vadd.f32 0.0, %v415
  %v417 = vpop.f32.mrf.mxu0
  %v418 = vadd.f32 0.0, %v417
  %419 = vmatmul.bf16.gmra.mxu0 %v297
  %v420 = vpop.f32.mrf.mxu0
  %v421 = vadd.f32 0.0, %v420
  %v422 = vpop.f32.mrf.mxu0
  %v423 = vadd.f32 0.0, %v422
  %424 = vmatmul.bf16.gmra.mxu0 %v300
  %v425 = vpop.f32.mrf.mxu0
  %v426 = vadd.f32 0.0, %v425
  %v427 = vpop.f32.mrf.mxu0
  %v428 = vadd.f32 0.0, %v427
  %429 = vmatmul.bf16.gmra.mxu0 %v303
  %v430 = vpop.f32.mrf.mxu0
  %v431 = vadd.f32 0.0, %v430
  %v432 = vpop.f32.mrf.mxu0
  %v433 = vadd.f32 0.0, %v432
  %434 = vmatmul.bf16.gmra.mxu0 %v306
  %v435 = vpop.f32.mrf.mxu0
  %v436 = vadd.f32 0.0, %v435
  %v437 = vpop.f32.mrf.mxu0
  %v438 = vadd.f32 0.0, %v437
  %439 = vmatmul.bf16.gmra.mxu0 %v309
  %v440 = vpop.f32.mrf.mxu0
  %v441 = vadd.f32 0.0, %v440
  %v442 = vpop.f32.mrf.mxu0
  %v443 = vadd.f32 0.0, %v442
  %444 = vmatmul.bf16.gmra.mxu0 %v312
  %v445 = vpop.f32.mrf.mxu0
  %v446 = vadd.f32 0.0, %v445
  %v447 = vpop.f32.mrf.mxu0
  %v448 = vadd.f32 0.0, %v447
  %449 = vmatmul.bf16.gmra.mxu0 %v315
  %v450 = vpop.f32.mrf.mxu0
  %v451 = vadd.f32 0.0, %v450
  %v452 = vpop.f32.mrf.mxu0
  %v453 = vadd.f32 0.0, %v452
  %454 = vmatmul.bf16.gmra.mxu0 %v318
  %v455 = vpop.f32.mrf.mxu0
  %v456 = vadd.f32 0.0, %v455
  %v457 = vpop.f32.mrf.mxu0
  %v458 = vadd.f32 0.0, %v457
  %459 = vmatmul.bf16.gmra.mxu0 %v321
  %v460 = vpop.f32.mrf.mxu0
  %v461 = vadd.f32 0.0, %v460
  %v462 = vpop.f32.mrf.mxu0
  %v463 = vadd.f32 0.0, %v462
  %464 = vmatmul.bf16.gmra.mxu0 %v324
  %v465 = vpop.f32.mrf.mxu0
  %v466 = vadd.f32 0.0, %v465
  %v467 = vpop.f32.mrf.mxu0
  %v468 = vadd.f32 0.0, %v467
  %469 = vmatmul.bf16.gmra.mxu0 %v327
  %v470 = vpop.f32.mrf.mxu0
  %v471 = vadd.f32 0.0, %v470
  %v472 = vpop.f32.mrf.mxu0
  %v473 = vadd.f32 0.0, %v472
  %474 = vmatmul.bf16.gmra.mxu0 %v330
  %v475 = vpop.f32.mrf.mxu0
  %v476 = vadd.f32 0.0, %v475
  %v477 = vpop.f32.mrf.mxu0
  %v478 = vadd.f32 0.0, %v477
  %479 = vmatmul.bf16.gmra.mxu0 %v333
  %v480 = vpop.f32.mrf.mxu0
  %v481 = vadd.f32 0.0, %v480
  %v482 = vpop.f32.mrf.mxu0
  %v483 = vadd.f32 0.0, %v482
  %484 = vmatmul.bf16.gmra.mxu0 %v336
  %v485 = vpop.f32.mrf.mxu0
  %v486 = vadd.f32 0.0, %v485
  %v487 = vpop.f32.mrf.mxu0
  %v488 = vadd.f32 0.0, %v487
  %489 = vmatmul.bf16.gmra.mxu0 %v339
  %v490 = vpop.f32.mrf.mxu0
  %v491 = vadd.f32 0.0, %v490
  %v492 = vpop.f32.mrf.mxu0
  %v493 = vadd.f32 0.0, %v492
  %494 = vmatmul.bf16.gmra.mxu0 %v342
  %v495 = vpop.f32.mrf.mxu0
  %v496 = vadd.f32 0.0, %v495
  %v497 = vpop.f32.mrf.mxu0
  %v498 = vadd.f32 0.0, %v497
  %499 = vmatmul.bf16.gmra.mxu0 %v345
  %v500 = vpop.f32.mrf.mxu0
  %v501 = vadd.f32 0.0, %v500
  %v502 = vpop.f32.mrf.mxu0
  %v503 = vadd.f32 0.0, %v502
  %504 = vmatmul.bf16.gmra.mxu0 %v348
  %v505 = vpop.f32.mrf.mxu0
  %v506 = vadd.f32 0.0, %v505
  %v507 = vpop.f32.mrf.mxu0
  %v508 = vadd.f32 0.0, %v507
  %509 = vmatmul.bf16.gmra.mxu0 %v351
  %v510 = vpop.f32.mrf.mxu0
  %v511 = vadd.f32 0.0, %v510
  %v512 = vpop.f32.mrf.mxu0
  %v513 = vadd.f32 0.0, %v512
  %514 = vmatmul.bf16.gmra.mxu0 %v354
  %v515 = vpop.f32.mrf.mxu0
  %v516 = vadd.f32 0.0, %v515
  %v517 = vpop.f32.mrf.mxu0
  %v518 = vadd.f32 0.0, %v517
  %519 = vmatmul.bf16.gmra.mxu0 %v357
  %v520 = vpop.f32.mrf.mxu0
  %v521 = vadd.f32 0.0, %v520
  %v522 = vpop.f32.mrf.mxu0
  %v523 = vadd.f32 0.0, %v522
  %524 = vmatmul.bf16.gmra.mxu0 %v360
  %v525 = vpop.f32.mrf.mxu0
  %v526 = vadd.f32 0.0, %v525
  %v527 = vpop.f32.mrf.mxu0
  %v528 = vadd.f32 0.0, %v527
  %529 = vmatmul.bf16.gmra.mxu0 %v363
  %v530 = vpop.f32.mrf.mxu0
  %v531 = vadd.f32 0.0, %v530
  %v532 = vpop.f32.mrf.mxu0
  %v533 = vadd.f32 0.0, %v532
  %534 = vmatmul.bf16.gmra.mxu0 %v366
  %v535 = vpop.f32.mrf.mxu0
  %v536 = vadd.f32 0.0, %v535
  %v537 = vpop.f32.mrf.mxu0
  %v538 = vadd.f32 0.0, %v537
  %539 = vmatmul.bf16.gmra.mxu0 %v369
  %v540 = vpop.f32.mrf.mxu0
  %v541 = vadd.f32 0.0, %v540
  %v542 = vpop.f32.mrf.mxu0
  %v543 = vadd.f32 0.0, %v542
  %544 = vmatmul.bf16.gmra.mxu0 %v372
  %v545 = vpop.f32.mrf.mxu0
  %v546 = vadd.f32 0.0, %v545
  %v547 = vpop.f32.mrf.mxu0
  %v548 = vadd.f32 0.0, %v547
  %549 = vdwg.mxu0
  %vm550 = vcmask 523264
  %v551 = vsel %vm550, %v391, 0.0
  %v552 = vsel %vm550, %v393, 0.0
  %v553 = vadd.f32 %v551, %v552
  %v554 = vsel %vm550, %v396, 0.0
  %v555 = vadd.f32 %v553, %v554
  %v556 = vsel %vm550, %v398, 0.0
  %v557 = vadd.f32 %v555, %v556
  %v558 = vsel %vm550, %v401, 0.0
  %v559 = vadd.f32 %v557, %v558
  %v560 = vsel %vm550, %v403, 0.0
  %v561 = vadd.f32 %v559, %v560
  %v562 = vsel %vm550, %v406, 0.0
  %v563 = vadd.f32 %v561, %v562
  %v564 = vsel %vm550, %v408, 0.0
  %v565 = vadd.f32 %v563, %v564
  %v566 = vsel %vm550, %v411, 0.0
  %v567 = vadd.f32 %v565, %v566
  %v568 = vsel %vm550, %v413, 0.0
  %v569 = vadd.f32 %v567, %v568
  %v570 = vsel %vm550, %v416, 0.0
  %v571 = vadd.f32 %v569, %v570
  %v572 = vsel %vm550, %v418, 0.0
  %v573 = vadd.f32 %v571, %v572
  %v574 = vsel %vm550, %v421, 0.0
  %v575 = vadd.f32 %v573, %v574
  %v576 = vsel %vm550, %v423, 0.0
  %v577 = vadd.f32 %v575, %v576
  %v578 = vsel %vm550, %v426, 0.0
  %v579 = vadd.f32 %v577, %v578
  %v580 = vsel %vm550, %v428, 0.0
  %v581 = vadd.f32 %v579, %v580
  %v582 = vsel %vm550, %v431, 0.0
  %v583 = vadd.f32 %v581, %v582
  %v584 = vsel %vm550, %v433, 0.0
  %v585 = vadd.f32 %v583, %v584
  %v586 = vsel %vm550, %v436, 0.0
  %v587 = vadd.f32 %v585, %v586
  %v588 = vsel %vm550, %v438, 0.0
  %v589 = vadd.f32 %v587, %v588
  %v590 = vsel %vm550, %v441, 0.0
  %v591 = vadd.f32 %v589, %v590
  %v592 = vsel %vm550, %v443, 0.0
  %v593 = vadd.f32 %v591, %v592
  %v594 = vsel %vm550, %v446, 0.0
  %v595 = vadd.f32 %v593, %v594
  %v596 = vsel %vm550, %v448, 0.0
  %v597 = vadd.f32 %v595, %v596
  %v598 = vsel %vm550, %v451, 0.0
  %v599 = vadd.f32 %v597, %v598
  %v600 = vsel %vm550, %v453, 0.0
  %v601 = vadd.f32 %v599, %v600
  %v602 = vsel %vm550, %v456, 0.0
  %v603 = vadd.f32 %v601, %v602
  %v604 = vsel %vm550, %v458, 0.0
  %v605 = vadd.f32 %v603, %v604
  %v606 = vsel %vm550, %v461, 0.0
  %v607 = vadd.f32 %v605, %v606
  %v608 = vsel %vm550, %v463, 0.0
  %v609 = vadd.f32 %v607, %v608
  %v610 = vsel %vm550, %v466, 0.0
  %v611 = vadd.f32 %v609, %v610
  %v612 = vsel %vm550, %v468, 0.0
  %v613 = vadd.f32 %v611, %v612
  %v614 = vsel %vm550, %v471, 0.0
  %v615 = vadd.f32 %v613, %v614
  %v616 = vsel %vm550, %v473, 0.0
  %v617 = vadd.f32 %v615, %v616
  %v618 = vsel %vm550, %v476, 0.0
  %v619 = vadd.f32 %v617, %v618
  %v620 = vsel %vm550, %v478, 0.0
  %v621 = vadd.f32 %v619, %v620
  %v622 = vsel %vm550, %v481, 0.0
  %v623 = vadd.f32 %v621, %v622
  %v624 = vsel %vm550, %v483, 0.0
  %v625 = vadd.f32 %v623, %v624
  %v626 = vsel %vm550, %v486, 0.0
  %v627 = vadd.f32 %v625, %v626
  %v628 = vsel %vm550, %v488, 0.0
  %v629 = vadd.f32 %v627, %v628
  %v630 = vsel %vm550, %v491, 0.0
  %v631 = vadd.f32 %v629, %v630
  %v632 = vsel %vm550, %v493, 0.0
  %v633 = vadd.f32 %v631, %v632
  %v634 = vsel %vm550, %v496, 0.0
  %v635 = vadd.f32 %v633, %v634
  %v636 = vsel %vm550, %v498, 0.0
  %v637 = vadd.f32 %v635, %v636
  %v638 = vsel %vm550, %v501, 0.0
  %v639 = vadd.f32 %v637, %v638
  %v640 = vsel %vm550, %v503, 0.0
  %v641 = vadd.f32 %v639, %v640
  %v642 = vsel %vm550, %v506, 0.0
  %v643 = vadd.f32 %v641, %v642
  %v644 = vsel %vm550, %v508, 0.0
  %v645 = vadd.f32 %v643, %v644
  %v646 = vsel %vm550, %v511, 0.0
  %v647 = vadd.f32 %v645, %v646
  %v648 = vsel %vm550, %v513, 0.0
  %v649 = vadd.f32 %v647, %v648
  %v650 = vsel %vm550, %v516, 0.0
  %v651 = vadd.f32 %v649, %v650
  %v652 = vsel %vm550, %v518, 0.0
  %v653 = vadd.f32 %v651, %v652
  %v654 = vsel %vm550, %v521, 0.0
  %v655 = vadd.f32 %v653, %v654
  %v656 = vsel %vm550, %v523, 0.0
  %v657 = vadd.f32 %v655, %v656
  %v658 = vsel %vm550, %v526, 0.0
  %v659 = vadd.f32 %v657, %v658
  %v660 = vsel %vm550, %v528, 0.0
  %v661 = vadd.f32 %v659, %v660
  %v662 = vsel %vm550, %v531, 0.0
  %v663 = vadd.f32 %v661, %v662
  %v664 = vsel %vm550, %v533, 0.0
  %v665 = vadd.f32 %v663, %v664
  %v666 = vsel %vm550, %v536, 0.0
  %v667 = vadd.f32 %v665, %v666
  %v668 = vsel %vm550, %v538, 0.0
  %v669 = vadd.f32 %v667, %v668
  %v670 = vsel %vm550, %v541, 0.0
  %v671 = vadd.f32 %v669, %v670
  %v672 = vsel %vm550, %v543, 0.0
  %v673 = vadd.f32 %v671, %v672
  %v674 = vsel %vm550, %v546, 0.0
  %v675 = vadd.f32 %v673, %v674
  %v676 = vsel %vm550, %v548, 0.0
  %v677 = vadd.f32 %v675, %v676
  %v678 = vrot.slane %v677, 4
  %v679 = vadd.f32 %v677, %v678
  %v680 = vrot.slane %v679, 2
  %v681 = vadd.f32 %v679, %v680
  %v682 = vrot.slane %v681, 1
  %v683 = vadd.f32 %v681, %v682
  %v684 = vmul.f32 %v391, %v391
  %v685 = vmul.f32 %v393, %v393
  %v686 = vmul.f32 %v396, %v396
  %v687 = vmul.f32 %v398, %v398
  %v688 = vmul.f32 %v401, %v401
  %v689 = vmul.f32 %v403, %v403
  %v690 = vmul.f32 %v406, %v406
  %v691 = vmul.f32 %v408, %v408
  %v692 = vmul.f32 %v411, %v411
  %v693 = vmul.f32 %v413, %v413
  %v694 = vmul.f32 %v416, %v416
  %v695 = vmul.f32 %v418, %v418
  %v696 = vmul.f32 %v421, %v421
  %v697 = vmul.f32 %v423, %v423
  %v698 = vmul.f32 %v426, %v426
  %v699 = vmul.f32 %v428, %v428
  %v700 = vmul.f32 %v431, %v431
  %v701 = vmul.f32 %v433, %v433
  %v702 = vmul.f32 %v436, %v436
  %v703 = vmul.f32 %v438, %v438
  %v704 = vmul.f32 %v441, %v441
  %v705 = vmul.f32 %v443, %v443
  %v706 = vmul.f32 %v446, %v446
  %v707 = vmul.f32 %v448, %v448
  %v708 = vmul.f32 %v451, %v451
  %v709 = vmul.f32 %v453, %v453
  %v710 = vmul.f32 %v456, %v456
  %v711 = vmul.f32 %v458, %v458
  %v712 = vmul.f32 %v461, %v461
  %v713 = vmul.f32 %v463, %v463
  %v714 = vmul.f32 %v466, %v466
  %v715 = vmul.f32 %v468, %v468
  %v716 = vmul.f32 %v471, %v471
  %v717 = vmul.f32 %v473, %v473
  %v718 = vmul.f32 %v476, %v476
  %v719 = vmul.f32 %v478, %v478
  %v720 = vmul.f32 %v481, %v481
  %v721 = vmul.f32 %v483, %v483
  %v722 = vmul.f32 %v486, %v486
  %v723 = vmul.f32 %v488, %v488
  %v724 = vmul.f32 %v491, %v491
  %v725 = vmul.f32 %v493, %v493
  %v726 = vmul.f32 %v496, %v496
  %v727 = vmul.f32 %v498, %v498
  %v728 = vmul.f32 %v501, %v501
  %v729 = vmul.f32 %v503, %v503
  %v730 = vmul.f32 %v506, %v506
  %v731 = vmul.f32 %v508, %v508
  %v732 = vmul.f32 %v511, %v511
  %v733 = vmul.f32 %v513, %v513
  %v734 = vmul.f32 %v516, %v516
  %v735 = vmul.f32 %v518, %v518
  %v736 = vmul.f32 %v521, %v521
  %v737 = vmul.f32 %v523, %v523
  %v738 = vmul.f32 %v526, %v526
  %v739 = vmul.f32 %v528, %v528
  %v740 = vmul.f32 %v531, %v531
  %v741 = vmul.f32 %v533, %v533
  %v742 = vmul.f32 %v536, %v536
  %v743 = vmul.f32 %v538, %v538
  %v744 = vmul.f32 %v541, %v541
  %v745 = vmul.f32 %v543, %v543
  %v746 = vmul.f32 %v546, %v546
  %v747 = vmul.f32 %v548, %v548
  %v748 = vsel %vm550, %v684, 0.0
  %v749 = vsel %vm550, %v685, 0.0
  %v750 = vadd.f32 %v748, %v749
  %v751 = vsel %vm550, %v686, 0.0
  %v752 = vadd.f32 %v750, %v751
  %v753 = vsel %vm550, %v687, 0.0
  %v754 = vadd.f32 %v752, %v753
  %v755 = vsel %vm550, %v688, 0.0
  %v756 = vadd.f32 %v754, %v755
  %v757 = vsel %vm550, %v689, 0.0
  %v758 = vadd.f32 %v756, %v757
  %v759 = vsel %vm550, %v690, 0.0
  %v760 = vadd.f32 %v758, %v759
  %v761 = vsel %vm550, %v691, 0.0
  %v762 = vadd.f32 %v760, %v761
  %v763 = vsel %vm550, %v692, 0.0
  %v764 = vadd.f32 %v762, %v763
  %v765 = vsel %vm550, %v693, 0.0
  %v766 = vadd.f32 %v764, %v765
  %v767 = vsel %vm550, %v694, 0.0
  %v768 = vadd.f32 %v766, %v767
  %v769 = vsel %vm550, %v695, 0.0
  %v770 = vadd.f32 %v768, %v769
  %v771 = vsel %vm550, %v696, 0.0
  %v772 = vadd.f32 %v770, %v771
  %v773 = vsel %vm550, %v697, 0.0
  %v774 = vadd.f32 %v772, %v773
  %v775 = vsel %vm550, %v698, 0.0
  %v776 = vadd.f32 %v774, %v775
  %v777 = vsel %vm550, %v699, 0.0
  %v778 = vadd.f32 %v776, %v777
  %v779 = vsel %vm550, %v700, 0.0
  %v780 = vadd.f32 %v778, %v779
  %v781 = vsel %vm550, %v701, 0.0
  %v782 = vadd.f32 %v780, %v781
  %v783 = vsel %vm550, %v702, 0.0
  %v784 = vadd.f32 %v782, %v783
  %v785 = vsel %vm550, %v703, 0.0
  %v786 = vadd.f32 %v784, %v785
  %v787 = vsel %vm550, %v704, 0.0
  %v788 = vadd.f32 %v786, %v787
  %v789 = vsel %vm550, %v705, 0.0
  %v790 = vadd.f32 %v788, %v789
  %v791 = vsel %vm550, %v706, 0.0
  %v792 = vadd.f32 %v790, %v791
  %v793 = vsel %vm550, %v707, 0.0
  %v794 = vadd.f32 %v792, %v793
  %v795 = vsel %vm550, %v708, 0.0
  %v796 = vadd.f32 %v794, %v795
  %v797 = vsel %vm550, %v709, 0.0
  %v798 = vadd.f32 %v796, %v797
  %v799 = vsel %vm550, %v710, 0.0
  %v800 = vadd.f32 %v798, %v799
  %v801 = vsel %vm550, %v711, 0.0
  %v802 = vadd.f32 %v800, %v801
  %v803 = vsel %vm550, %v712, 0.0
  %v804 = vadd.f32 %v802, %v803
  %v805 = vsel %vm550, %v713, 0.0
  %v806 = vadd.f32 %v804, %v805
  %v807 = vsel %vm550, %v714, 0.0
  %v808 = vadd.f32 %v806, %v807
  %v809 = vsel %vm550, %v715, 0.0
  %v810 = vadd.f32 %v808, %v809
  %v811 = vsel %vm550, %v716, 0.0
  %v812 = vadd.f32 %v810, %v811
  %v813 = vsel %vm550, %v717, 0.0
  %v814 = vadd.f32 %v812, %v813
  %v815 = vsel %vm550, %v718, 0.0
  %v816 = vadd.f32 %v814, %v815
  %v817 = vsel %vm550, %v719, 0.0
  %v818 = vadd.f32 %v816, %v817
  %v819 = vsel %vm550, %v720, 0.0
  %v820 = vadd.f32 %v818, %v819
  %v821 = vsel %vm550, %v721, 0.0
  %v822 = vadd.f32 %v820, %v821
  %v823 = vsel %vm550, %v722, 0.0
  %v824 = vadd.f32 %v822, %v823
  %v825 = vsel %vm550, %v723, 0.0
  %v826 = vadd.f32 %v824, %v825
  %v827 = vsel %vm550, %v724, 0.0
  %v828 = vadd.f32 %v826, %v827
  %v829 = vsel %vm550, %v725, 0.0
  %v830 = vadd.f32 %v828, %v829
  %v831 = vsel %vm550, %v726, 0.0
  %v832 = vadd.f32 %v830, %v831
  %v833 = vsel %vm550, %v727, 0.0
  %v834 = vadd.f32 %v832, %v833
  %v835 = vsel %vm550, %v728, 0.0
  %v836 = vadd.f32 %v834, %v835
  %v837 = vsel %vm550, %v729, 0.0
  %v838 = vadd.f32 %v836, %v837
  %v839 = vsel %vm550, %v730, 0.0
  %v840 = vadd.f32 %v838, %v839
  %v841 = vsel %vm550, %v731, 0.0
  %v842 = vadd.f32 %v840, %v841
  %v843 = vsel %vm550, %v732, 0.0
  %v844 = vadd.f32 %v842, %v843
  %v845 = vsel %vm550, %v733, 0.0
  %v846 = vadd.f32 %v844, %v845
  %v847 = vsel %vm550, %v734, 0.0
  %v848 = vadd.f32 %v846, %v847
  %v849 = vsel %vm550, %v735, 0.0
  %v850 = vadd.f32 %v848, %v849
  %v851 = vsel %vm550, %v736, 0.0
  %v852 = vadd.f32 %v850, %v851
  %v853 = vsel %vm550, %v737, 0.0
  %v854 = vadd.f32 %v852, %v853
  %v855 = vsel %vm550, %v738, 0.0
  %v856 = vadd.f32 %v854, %v855
  %v857 = vsel %vm550, %v739, 0.0
  %v858 = vadd.f32 %v856, %v857
  %v859 = vsel %vm550, %v740, 0.0
  %v860 = vadd.f32 %v858, %v859
  %v861 = vsel %vm550, %v741, 0.0
  %v862 = vadd.f32 %v860, %v861
  %v863 = vsel %vm550, %v742, 0.0
  %v864 = vadd.f32 %v862, %v863
  %v865 = vsel %vm550, %v743, 0.0
  %v866 = vadd.f32 %v864, %v865
  %v867 = vsel %vm550, %v744, 0.0
  %v868 = vadd.f32 %v866, %v867
  %v869 = vsel %vm550, %v745, 0.0
  %v870 = vadd.f32 %v868, %v869
  %v871 = vsel %vm550, %v746, 0.0
  %v872 = vadd.f32 %v870, %v871
  %v873 = vsel %vm550, %v747, 0.0
  %v874 = vadd.f32 %v872, %v873
  %v875 = vrot.slane %v874, 4
  %v876 = vadd.f32 %v874, %v875
  %v877 = vrot.slane %v876, 2
  %v878 = vadd.f32 %v876, %v877
  %v879 = vrot.slane %v878, 1
  %v880 = vadd.f32 %v878, %v879
  %v881 = vmul.f32 %v683, 0.001953125
  %v882 = vmul.f32 %v880, 0.001953125
  %v883 = vmul.f32 %v881, %v881
  %v884 = vsub.f32 %v882, %v883
  %v885 = vmax.f32 %v884, 0.0
  %v886 = vld [vmem:[%s2] sm:$0x1]
  %v887 = vadd.f32 %v885, 1e-05
  %v888 = vrsqrt.pop %v887
  %v889 = vmul.f32 %v888, %v887
  %v890 = vmul.f32 %v889, %v888
  %v891 = vmul.f32 0.5, %v890
  %v892 = vsub.f32 1.5, %v891
  %v893 = vmul.f32 %v888, %v892
  %vm894 = vweird.f32 %v887
  %vm895 = vweird.f32 %v888
  %vm896 = vmor %vm894, %vm895
  %v897 = vsel %vm896, %v888, %v893
  %v898 = vmul.f32 %v886, %v897
  %v899 = vld [vmem:[%s3] sm:$0x1]
  %v900 = vmul.f32 %v881, %v898
  %v901 = vsub.f32 %v899, %v900
  %v903 = vperm.slane %v898, 0
  %v905 = vmul.f32 %v391, %v903
  %v906 = vmul.f32 %v393, %v903
  %v907 = vmul.f32 %v396, %v903
  %v908 = vmul.f32 %v398, %v903
  %v909 = vmul.f32 %v401, %v903
  %v910 = vmul.f32 %v403, %v903
  %v911 = vmul.f32 %v406, %v903
  %v912 = vmul.f32 %v408, %v903
  %v913 = vmul.f32 %v411, %v903
  %v914 = vmul.f32 %v413, %v903
  %v915 = vmul.f32 %v416, %v903
  %v916 = vmul.f32 %v418, %v903
  %v917 = vmul.f32 %v421, %v903
  %v918 = vmul.f32 %v423, %v903
  %v919 = vmul.f32 %v426, %v903
  %v920 = vmul.f32 %v428, %v903
  %v921 = vmul.f32 %v431, %v903
  %v922 = vmul.f32 %v433, %v903
  %v923 = vmul.f32 %v436, %v903
  %v924 = vmul.f32 %v438, %v903
  %v925 = vmul.f32 %v441, %v903
  %v926 = vmul.f32 %v443, %v903
  %v927 = vmul.f32 %v446, %v903
  %v928 = vmul.f32 %v448, %v903
  %v929 = vmul.f32 %v451, %v903
  %v930 = vmul.f32 %v453, %v903
  %v931 = vmul.f32 %v456, %v903
  %v932 = vmul.f32 %v458, %v903
  %v933 = vmul.f32 %v461, %v903
  %v934 = vmul.f32 %v463, %v903
  %v935 = vmul.f32 %v466, %v903
  %v936 = vmul.f32 %v468, %v903
  %v937 = vmul.f32 %v471, %v903
  %v938 = vmul.f32 %v473, %v903
  %v939 = vmul.f32 %v476, %v903
  %v940 = vmul.f32 %v478, %v903
  %v941 = vmul.f32 %v481, %v903
  %v942 = vmul.f32 %v483, %v903
  %v943 = vmul.f32 %v486, %v903
  %v944 = vmul.f32 %v488, %v903
  %v945 = vmul.f32 %v491, %v903
  %v946 = vmul.f32 %v493, %v903
  %v947 = vmul.f32 %v496, %v903
  %v948 = vmul.f32 %v498, %v903
  %v949 = vmul.f32 %v501, %v903
  %v950 = vmul.f32 %v503, %v903
  %v951 = vmul.f32 %v506, %v903
  %v952 = vmul.f32 %v508, %v903
  %v953 = vmul.f32 %v511, %v903
  %v954 = vmul.f32 %v513, %v903
  %v955 = vmul.f32 %v516, %v903
  %v956 = vmul.f32 %v518, %v903
  %v957 = vmul.f32 %v521, %v903
  %v958 = vmul.f32 %v523, %v903
  %v959 = vmul.f32 %v526, %v903
  %v960 = vmul.f32 %v528, %v903
  %v961 = vmul.f32 %v531, %v903
  %v962 = vmul.f32 %v533, %v903
  %v963 = vmul.f32 %v536, %v903
  %v964 = vmul.f32 %v538, %v903
  %v965 = vmul.f32 %v541, %v903
  %v966 = vmul.f32 %v543, %v903
  %v967 = vmul.f32 %v546, %v903
  %v968 = vmul.f32 %v548, %v903
  %v970 = vperm.slane %v901, 0
  %v972 = vadd.f32 %v905, %v970
  %v973 = vadd.f32 %v906, %v970
  %v974 = vadd.f32 %v907, %v970
  %v975 = vadd.f32 %v908, %v970
  %v976 = vadd.f32 %v909, %v970
  %v977 = vadd.f32 %v910, %v970
  %v978 = vadd.f32 %v911, %v970
  %v979 = vadd.f32 %v912, %v970
  %v980 = vadd.f32 %v913, %v970
  %v981 = vadd.f32 %v914, %v970
  %v982 = vadd.f32 %v915, %v970
  %v983 = vadd.f32 %v916, %v970
  %v984 = vadd.f32 %v917, %v970
  %v985 = vadd.f32 %v918, %v970
  %v986 = vadd.f32 %v919, %v970
  %v987 = vadd.f32 %v920, %v970
  %v988 = vadd.f32 %v921, %v970
  %v989 = vadd.f32 %v922, %v970
  %v990 = vadd.f32 %v923, %v970
  %v991 = vadd.f32 %v924, %v970
  %v992 = vadd.f32 %v925, %v970
  %v993 = vadd.f32 %v926, %v970
  %v994 = vadd.f32 %v927, %v970
  %v995 = vadd.f32 %v928, %v970
  %v996 = vadd.f32 %v929, %v970
  %v997 = vadd.f32 %v930, %v970
  %v998 = vadd.f32 %v931, %v970
  %v999 = vadd.f32 %v932, %v970
  %v1000 = vadd.f32 %v933, %v970
  %v1001 = vadd.f32 %v934, %v970
  %v1002 = vadd.f32 %v935, %v970
  %v1003 = vadd.f32 %v936, %v970
  %v1004 = vadd.f32 %v937, %v970
  %v1005 = vadd.f32 %v938, %v970
  %v1006 = vadd.f32 %v939, %v970
  %v1007 = vadd.f32 %v940, %v970
  %v1008 = vadd.f32 %v941, %v970
  %v1009 = vadd.f32 %v942, %v970
  %v1010 = vadd.f32 %v943, %v970
  %v1011 = vadd.f32 %v944, %v970
  %v1012 = vadd.f32 %v945, %v970
  %v1013 = vadd.f32 %v946, %v970
  %v1014 = vadd.f32 %v947, %v970
  %v1015 = vadd.f32 %v948, %v970
  %v1016 = vadd.f32 %v949, %v970
  %v1017 = vadd.f32 %v950, %v970
  %v1018 = vadd.f32 %v951, %v970
  %v1019 = vadd.f32 %v952, %v970
  %v1020 = vadd.f32 %v953, %v970
  %v1021 = vadd.f32 %v954, %v970
  %v1022 = vadd.f32 %v955, %v970
  %v1023 = vadd.f32 %v956, %v970
  %v1024 = vadd.f32 %v957, %v970
  %v1025 = vadd.f32 %v958, %v970
  %v1026 = vadd.f32 %v959, %v970
  %v1027 = vadd.f32 %v960, %v970
  %v1028 = vadd.f32 %v961, %v970
  %v1029 = vadd.f32 %v962, %v970
  %v1030 = vadd.f32 %v963, %v970
  %v1031 = vadd.f32 %v964, %v970
  %v1032 = vadd.f32 %v965, %v970
  %v1033 = vadd.f32 %v966, %v970
  %v1034 = vadd.f32 %v967, %v970
  %v1035 = vadd.f32 %v968, %v970
  %vm1036 = vcmp.ge.f32.partialorder %v972, 0.0
  %vm1037 = vcmp.ge.f32.partialorder %v973, 0.0
  %vm1038 = vcmp.ge.f32.partialorder %v974, 0.0
  %vm1039 = vcmp.ge.f32.partialorder %v975, 0.0
  %vm1040 = vcmp.ge.f32.partialorder %v976, 0.0
  %vm1041 = vcmp.ge.f32.partialorder %v977, 0.0
  %vm1042 = vcmp.ge.f32.partialorder %v978, 0.0
  %vm1043 = vcmp.ge.f32.partialorder %v979, 0.0
  %vm1044 = vcmp.ge.f32.partialorder %v980, 0.0
  %vm1045 = vcmp.ge.f32.partialorder %v981, 0.0
  %vm1046 = vcmp.ge.f32.partialorder %v982, 0.0
  %vm1047 = vcmp.ge.f32.partialorder %v983, 0.0
  %vm1048 = vcmp.ge.f32.partialorder %v984, 0.0
  %vm1049 = vcmp.ge.f32.partialorder %v985, 0.0
  %vm1050 = vcmp.ge.f32.partialorder %v986, 0.0
  %vm1051 = vcmp.ge.f32.partialorder %v987, 0.0
  %vm1052 = vcmp.ge.f32.partialorder %v988, 0.0
  %vm1053 = vcmp.ge.f32.partialorder %v989, 0.0
  %vm1054 = vcmp.ge.f32.partialorder %v990, 0.0
  %vm1055 = vcmp.ge.f32.partialorder %v991, 0.0
  %vm1056 = vcmp.ge.f32.partialorder %v992, 0.0
  %vm1057 = vcmp.ge.f32.partialorder %v993, 0.0
  %vm1058 = vcmp.ge.f32.partialorder %v994, 0.0
  %vm1059 = vcmp.ge.f32.partialorder %v995, 0.0
  %vm1060 = vcmp.ge.f32.partialorder %v996, 0.0
  %vm1061 = vcmp.ge.f32.partialorder %v997, 0.0
  %vm1062 = vcmp.ge.f32.partialorder %v998, 0.0
  %vm1063 = vcmp.ge.f32.partialorder %v999, 0.0
  %vm1064 = vcmp.ge.f32.partialorder %v1000, 0.0
  %vm1065 = vcmp.ge.f32.partialorder %v1001, 0.0
  %vm1066 = vcmp.ge.f32.partialorder %v1002, 0.0
  %vm1067 = vcmp.ge.f32.partialorder %v1003, 0.0
  %vm1068 = vcmp.ge.f32.partialorder %v1004, 0.0
  %vm1069 = vcmp.ge.f32.partialorder %v1005, 0.0
  %vm1070 = vcmp.ge.f32.partialorder %v1006, 0.0
  %vm1071 = vcmp.ge.f32.partialorder %v1007, 0.0
  %vm1072 = vcmp.ge.f32.partialorder %v1008, 0.0
  %vm1073 = vcmp.ge.f32.partialorder %v1009, 0.0
  %vm1074 = vcmp.ge.f32.partialorder %v1010, 0.0
  %vm1075 = vcmp.ge.f32.partialorder %v1011, 0.0
  %vm1076 = vcmp.ge.f32.partialorder %v1012, 0.0
  %vm1077 = vcmp.ge.f32.partialorder %v1013, 0.0
  %vm1078 = vcmp.ge.f32.partialorder %v1014, 0.0
  %vm1079 = vcmp.ge.f32.partialorder %v1015, 0.0
  %vm1080 = vcmp.ge.f32.partialorder %v1016, 0.0
  %vm1081 = vcmp.ge.f32.partialorder %v1017, 0.0
  %vm1082 = vcmp.ge.f32.partialorder %v1018, 0.0
  %vm1083 = vcmp.ge.f32.partialorder %v1019, 0.0
  %vm1084 = vcmp.ge.f32.partialorder %v1020, 0.0
  %vm1085 = vcmp.ge.f32.partialorder %v1021, 0.0
  %vm1086 = vcmp.ge.f32.partialorder %v1022, 0.0
  %vm1087 = vcmp.ge.f32.partialorder %v1023, 0.0
  %vm1088 = vcmp.ge.f32.partialorder %v1024, 0.0
  %vm1089 = vcmp.ge.f32.partialorder %v1025, 0.0
  %vm1090 = vcmp.ge.f32.partialorder %v1026, 0.0
  %vm1091 = vcmp.ge.f32.partialorder %v1027, 0.0
  %vm1092 = vcmp.ge.f32.partialorder %v1028, 0.0
  %vm1093 = vcmp.ge.f32.partialorder %v1029, 0.0
  %vm1094 = vcmp.ge.f32.partialorder %v1030, 0.0
  %vm1095 = vcmp.ge.f32.partialorder %v1031, 0.0
  %vm1096 = vcmp.ge.f32.partialorder %v1032, 0.0
  %vm1097 = vcmp.ge.f32.partialorder %v1033, 0.0
  %vm1098 = vcmp.ge.f32.partialorder %v1034, 0.0
  %vm1099 = vcmp.ge.f32.partialorder %v1035, 0.0
  %v1100 = vmul.f32 %v972, 0.1
  %v1101 = vmul.f32 %v973, 0.1
  %v1102 = vmul.f32 %v974, 0.1
  %v1103 = vmul.f32 %v975, 0.1
  %v1104 = vmul.f32 %v976, 0.1
  %v1105 = vmul.f32 %v977, 0.1
  %v1106 = vmul.f32 %v978, 0.1
  %v1107 = vmul.f32 %v979, 0.1
  %v1108 = vmul.f32 %v980, 0.1
  %v1109 = vmul.f32 %v981, 0.1
  %v1110 = vmul.f32 %v982, 0.1
  %v1111 = vmul.f32 %v983, 0.1
  %v1112 = vmul.f32 %v984, 0.1
  %v1113 = vmul.f32 %v985, 0.1
  %v1114 = vmul.f32 %v986, 0.1
  %v1115 = vmul.f32 %v987, 0.1
  %v1116 = vmul.f32 %v988, 0.1
  %v1117 = vmul.f32 %v989, 0.1
  %v1118 = vmul.f32 %v990, 0.1
  %v1119 = vmul.f32 %v991, 0.1
  %v1120 = vmul.f32 %v992, 0.1
  %v1121 = vmul.f32 %v993, 0.1
  %v1122 = vmul.f32 %v994, 0.1
  %v1123 = vmul.f32 %v995, 0.1
  %v1124 = vmul.f32 %v996, 0.1
  %v1125 = vmul.f32 %v997, 0.1
  %v1126 = vmul.f32 %v998, 0.1
  %v1127 = vmul.f32 %v999, 0.1
  %v1128 = vmul.f32 %v1000, 0.1
  %v1129 = vmul.f32 %v1001, 0.1
  %v1130 = vmul.f32 %v1002, 0.1
  %v1131 = vmul.f32 %v1003, 0.1
  %v1132 = vmul.f32 %v1004, 0.1
  %v1133 = vmul.f32 %v1005, 0.1
  %v1134 = vmul.f32 %v1006, 0.1
  %v1135 = vmul.f32 %v1007, 0.1
  %v1136 = vmul.f32 %v1008, 0.1
  %v1137 = vmul.f32 %v1009, 0.1
  %v1138 = vmul.f32 %v1010, 0.1
  %v1139 = vmul.f32 %v1011, 0.1
  %v1140 = vmul.f32 %v1012, 0.1
  %v1141 = vmul.f32 %v1013, 0.1
  %v1142 = vmul.f32 %v1014, 0.1
  %v1143 = vmul.f32 %v1015, 0.1
  %v1144 = vmul.f32 %v1016, 0.1
  %v1145 = vmul.f32 %v1017, 0.1
  %v1146 = vmul.f32 %v1018, 0.1
  %v1147 = vmul.f32 %v1019, 0.1
  %v1148 = vmul.f32 %v1020, 0.1
  %v1149 = vmul.f32 %v1021, 0.1
  %v1150 = vmul.f32 %v1022, 0.1
  %v1151 = vmul.f32 %v1023, 0.1
  %v1152 = vmul.f32 %v1024, 0.1
  %v1153 = vmul.f32 %v1025, 0.1
  %v1154 = vmul.f32 %v1026, 0.1
  %v1155 = vmul.f32 %v1027, 0.1
  %v1156 = vmul.f32 %v1028, 0.1
  %v1157 = vmul.f32 %v1029, 0.1
  %v1158 = vmul.f32 %v1030, 0.1
  %v1159 = vmul.f32 %v1031, 0.1
  %v1160 = vmul.f32 %v1032, 0.1
  %v1161 = vmul.f32 %v1033, 0.1
  %v1162 = vmul.f32 %v1034, 0.1
  %v1163 = vmul.f32 %v1035, 0.1
  %v1164 = vsel %vm1036, %v972, %v1100
  %v1165 = vsel %vm1037, %v973, %v1101
  %v1166 = vsel %vm1038, %v974, %v1102
  %v1167 = vsel %vm1039, %v975, %v1103
  %v1168 = vsel %vm1040, %v976, %v1104
  %v1169 = vsel %vm1041, %v977, %v1105
  %v1170 = vsel %vm1042, %v978, %v1106
  %v1171 = vsel %vm1043, %v979, %v1107
  %v1172 = vsel %vm1044, %v980, %v1108
  %v1173 = vsel %vm1045, %v981, %v1109
  %v1174 = vsel %vm1046, %v982, %v1110
  %v1175 = vsel %vm1047, %v983, %v1111
  %v1176 = vsel %vm1048, %v984, %v1112
  %v1177 = vsel %vm1049, %v985, %v1113
  %v1178 = vsel %vm1050, %v986, %v1114
  %v1179 = vsel %vm1051, %v987, %v1115
  %v1180 = vsel %vm1052, %v988, %v1116
  %v1181 = vsel %vm1053, %v989, %v1117
  %v1182 = vsel %vm1054, %v990, %v1118
  %v1183 = vsel %vm1055, %v991, %v1119
  %v1184 = vsel %vm1056, %v992, %v1120
  %v1185 = vsel %vm1057, %v993, %v1121
  %v1186 = vsel %vm1058, %v994, %v1122
  %v1187 = vsel %vm1059, %v995, %v1123
  %v1188 = vsel %vm1060, %v996, %v1124
  %v1189 = vsel %vm1061, %v997, %v1125
  %v1190 = vsel %vm1062, %v998, %v1126
  %v1191 = vsel %vm1063, %v999, %v1127
  %v1192 = vsel %vm1064, %v1000, %v1128
  %v1193 = vsel %vm1065, %v1001, %v1129
  %v1194 = vsel %vm1066, %v1002, %v1130
  %v1195 = vsel %vm1067, %v1003, %v1131
  %v1196 = vsel %vm1068, %v1004, %v1132
  %v1197 = vsel %vm1069, %v1005, %v1133
  %v1198 = vsel %vm1070, %v1006, %v1134
  %v1199 = vsel %vm1071, %v1007, %v1135
  %v1200 = vsel %vm1072, %v1008, %v1136
  %v1201 = vsel %vm1073, %v1009, %v1137
  %v1202 = vsel %vm1074, %v1010, %v1138
  %v1203 = vsel %vm1075, %v1011, %v1139
  %v1204 = vsel %vm1076, %v1012, %v1140
  %v1205 = vsel %vm1077, %v1013, %v1141
  %v1206 = vsel %vm1078, %v1014, %v1142
  %v1207 = vsel %vm1079, %v1015, %v1143
  %v1208 = vsel %vm1080, %v1016, %v1144
  %v1209 = vsel %vm1081, %v1017, %v1145
  %v1210 = vsel %vm1082, %v1018, %v1146
  %v1211 = vsel %vm1083, %v1019, %v1147
  %v1212 = vsel %vm1084, %v1020, %v1148
  %v1213 = vsel %vm1085, %v1021, %v1149
  %v1214 = vsel %vm1086, %v1022, %v1150
  %v1215 = vsel %vm1087, %v1023, %v1151
  %v1216 = vsel %vm1088, %v1024, %v1152
  %v1217 = vsel %vm1089, %v1025, %v1153
  %v1218 = vsel %vm1090, %v1026, %v1154
  %v1219 = vsel %vm1091, %v1027, %v1155
  %v1220 = vsel %vm1092, %v1028, %v1156
  %v1221 = vsel %vm1093, %v1029, %v1157
  %v1222 = vsel %vm1094, %v1030, %v1158
  %v1223 = vsel %vm1095, %v1031, %v1159
  %v1224 = vsel %vm1096, %v1032, %v1160
  %v1225 = vsel %vm1097, %v1033, %v1161
  %v1226 = vsel %vm1098, %v1034, %v1162
  %v1227 = vsel %vm1099, %v1035, %v1163
  %v1228 = vmax.f32 %v1164, %v1180
  %v1229 = vmax.f32 %v1165, %v1181
  %v1230 = vmax.f32 %v1166, %v1182
  %v1231 = vmax.f32 %v1167, %v1183
  %v1232 = vmax.f32 %v1168, %v1184
  %v1233 = vmax.f32 %v1169, %v1185
  %v1234 = vmax.f32 %v1170, %v1186
  %v1235 = vmax.f32 %v1171, %v1187
  %v1236 = vmax.f32 %v1172, %v1188
  %v1237 = vmax.f32 %v1173, %v1189
  %v1238 = vmax.f32 %v1174, %v1190
  %v1239 = vmax.f32 %v1175, %v1191
  %v1240 = vmax.f32 %v1176, %v1192
  %v1241 = vmax.f32 %v1177, %v1193
  %v1242 = vmax.f32 %v1178, %v1194
  %v1243 = vmax.f32 %v1179, %v1195
  %v1244 = vmax.f32 %v1196, %v1212
  %v1245 = vmax.f32 %v1197, %v1213
  %v1246 = vmax.f32 %v1198, %v1214
  %v1247 = vmax.f32 %v1199, %v1215
  %v1248 = vmax.f32 %v1200, %v1216
  %v1249 = vmax.f32 %v1201, %v1217
  %v1250 = vmax.f32 %v1202, %v1218
  %v1251 = vmax.f32 %v1203, %v1219
  %v1252 = vmax.f32 %v1204, %v1220
  %v1253 = vmax.f32 %v1205, %v1221
  %v1254 = vmax.f32 %v1206, %v1222
  %v1255 = vmax.f32 %v1207, %v1223
  %v1256 = vmax.f32 %v1208, %v1224
  %v1257 = vmax.f32 %v1209, %v1225
  %v1258 = vmax.f32 %v1210, %v1226
  %v1259 = vmax.f32 %v1211, %v1227
  %v1260 = vmax.f32 %v1228, %v1244
  %v1261 = vmax.f32 %v1229, %v1245
  %v1262 = vmax.f32 %v1230, %v1246
  %v1263 = vmax.f32 %v1231, %v1247
  %v1264 = vmax.f32 %v1232, %v1248
  %v1265 = vmax.f32 %v1233, %v1249
  %v1266 = vmax.f32 %v1234, %v1250
  %v1267 = vmax.f32 %v1235, %v1251
  %v1268 = vmax.f32 %v1236, %v1252
  %v1269 = vmax.f32 %v1237, %v1253
  %v1270 = vmax.f32 %v1238, %v1254
  %v1271 = vmax.f32 %v1239, %v1255
  %v1272 = vmax.f32 %v1240, %v1256
  %v1273 = vmax.f32 %v1241, %v1257
  %v1274 = vmax.f32 %v1242, %v1258
  %v1275 = vmax.f32 %v1243, %v1259
  %v1276 = vpack.c.bf16 %v1261, %v1260
  %v1277 = vpack.c.bf16 %v1263, %v1262
  %v1278 = vpack.c.bf16 %v1265, %v1264
  %v1279 = vpack.c.bf16 %v1267, %v1266
  %v1280 = vpack.c.bf16 %v1269, %v1268
  %v1281 = vpack.c.bf16 %v1271, %v1270
  %v1282 = vpack.c.bf16 %v1273, %v1272
  %v1283 = vpack.c.bf16 %v1275, %v1274
  %v1284 = vld [vmem:[%s4] sm:$0xf]
  %v1285 = vld [vmem:[%s4 + $0x4] sm:$0xf]
  %v1286 = vld [vmem:[%s4 + $0x8] sm:$0xf]
  %v1287 = vld [vmem:[%s4 + $0xc] sm:$0xf]
  %v1288 = vld [vmem:[%s4 + $0x10] sm:$0xf]
  %v1289 = vld [vmem:[%s4 + $0x14] sm:$0xf]
  %v1290 = vld [vmem:[%s4 + $0x18] sm:$0xf]
  %v1291 = vld [vmem:[%s4 + $0x1c] sm:$0xf]
  %v1300 = vunpack.c.l.b16 %v1284
  %v1301 = vunpack.c.l.b16 %v1285
  %v1302 = vunpack.c.l.b16 %v1286
  %v1303 = vunpack.c.l.b16 %v1287
  %v1304 = vunpack.c.l.b16 %v1288
  %v1305 = vunpack.c.l.b16 %v1289
  %v1306 = vunpack.c.l.b16 %v1290
  %v1307 = vunpack.c.l.b16 %v1291
  %v1308 = vpack.c.b16 %v1301, %v1300
  %v1309 = vpack.c.b16 %v1303, %v1302
  %v1310 = vpack.c.b16 %v1305, %v1304
  %v1311 = vpack.c.b16 %v1307, %v1306
  %v1317 = vsel %vm550, %v1276, 0
  %v1320 = vsel %vm550, %v1277, 0
  %v1323 = vsel %vm550, %v1278, 0
  %v1326 = vsel %vm550, %v1279, 0
  %v1329 = vsel %vm550, %v1280, 0
  %v1332 = vsel %vm550, %v1281, 0
  %v1335 = vsel %vm550, %v1282, 0
  %v1338 = vsel %vm550, %v1283, 0
  %1340 = vmatpush.bf16.msra.mxu0 0
  %1341 = vmatpush.bf16.msra.mxu0 0
  %1342 = vmatpush.bf16.msra.mxu0 0
  %1343 = vmatpush.bf16.msra.mxu0 0
  %1344 = vmatpush.bf16.msra.mxu0 %v1311
  %1345 = vmatpush.bf16.msra.mxu0 %v1310
  %1346 = vmatpush.bf16.msra.mxu0 %v1309
  %1347 = vmatpush.bf16.msra.mxu0 %v1308
  %1348 = vmatmul.bf16.gmra.mxu0 %v1317
  %v1349 = vpop.f32.mrf.mxu0
  %v1350 = vadd.f32 0.0, %v1349
  %v1351 = vpop.f32.mrf.mxu0
  %v1352 = vadd.f32 0.0, %v1351
  %1353 = vmatmul.bf16.gmra.mxu0 %v1320
  %v1354 = vpop.f32.mrf.mxu0
  %v1355 = vadd.f32 0.0, %v1354
  %v1356 = vpop.f32.mrf.mxu0
  %v1357 = vadd.f32 0.0, %v1356
  %1358 = vmatmul.bf16.gmra.mxu0 %v1323
  %v1359 = vpop.f32.mrf.mxu0
  %v1360 = vadd.f32 0.0, %v1359
  %v1361 = vpop.f32.mrf.mxu0
  %v1362 = vadd.f32 0.0, %v1361
  %1363 = vmatmul.bf16.gmra.mxu0 %v1326
  %v1364 = vpop.f32.mrf.mxu0
  %v1365 = vadd.f32 0.0, %v1364
  %v1366 = vpop.f32.mrf.mxu0
  %v1367 = vadd.f32 0.0, %v1366
  %1368 = vmatmul.bf16.gmra.mxu0 %v1329
  %v1369 = vpop.f32.mrf.mxu0
  %v1370 = vadd.f32 0.0, %v1369
  %v1371 = vpop.f32.mrf.mxu0
  %v1372 = vadd.f32 0.0, %v1371
  %1373 = vmatmul.bf16.gmra.mxu0 %v1332
  %v1374 = vpop.f32.mrf.mxu0
  %v1375 = vadd.f32 0.0, %v1374
  %v1376 = vpop.f32.mrf.mxu0
  %v1377 = vadd.f32 0.0, %v1376
  %1378 = vmatmul.bf16.gmra.mxu0 %v1335
  %v1379 = vpop.f32.mrf.mxu0
  %v1380 = vadd.f32 0.0, %v1379
  %v1381 = vpop.f32.mrf.mxu0
  %v1382 = vadd.f32 0.0, %v1381
  %1383 = vmatmul.bf16.gmra.mxu0 %v1338
  %v1384 = vpop.f32.mrf.mxu0
  %v1385 = vadd.f32 0.0, %v1384
  %v1386 = vpop.f32.mrf.mxu0
  %v1387 = vadd.f32 0.0, %v1386
  %1388 = vdwg.mxu0
  %v1389 = vadd.f32 %v1350, %v1352
  %v1390 = vadd.f32 %v1389, %v1355
  %v1391 = vadd.f32 %v1390, %v1357
  %v1392 = vadd.f32 %v1391, %v1360
  %v1393 = vadd.f32 %v1392, %v1362
  %v1394 = vadd.f32 %v1393, %v1365
  %v1395 = vadd.f32 %v1394, %v1367
  %v1396 = vadd.f32 %v1395, %v1370
  %v1397 = vadd.f32 %v1396, %v1372
  %v1398 = vadd.f32 %v1397, %v1375
  %v1399 = vadd.f32 %v1398, %v1377
  %v1400 = vadd.f32 %v1399, %v1380
  %v1401 = vadd.f32 %v1400, %v1382
  %v1402 = vadd.f32 %v1401, %v1385
  %v1403 = vadd.f32 %v1402, %v1387
  %v1404 = vrot.slane %v1403, 4
  %v1405 = vadd.f32 %v1403, %v1404
  %v1406 = vrot.slane %v1405, 2
  %v1407 = vadd.f32 %v1405, %v1406
  %v1408 = vrot.slane %v1407, 1
  %v1409 = vadd.f32 %v1407, %v1408
  %v1410 = vmul.f32 %v1350, %v1350
  %v1411 = vmul.f32 %v1352, %v1352
  %v1412 = vmul.f32 %v1355, %v1355
  %v1413 = vmul.f32 %v1357, %v1357
  %v1414 = vmul.f32 %v1360, %v1360
  %v1415 = vmul.f32 %v1362, %v1362
  %v1416 = vmul.f32 %v1365, %v1365
  %v1417 = vmul.f32 %v1367, %v1367
  %v1418 = vmul.f32 %v1370, %v1370
  %v1419 = vmul.f32 %v1372, %v1372
  %v1420 = vmul.f32 %v1375, %v1375
  %v1421 = vmul.f32 %v1377, %v1377
  %v1422 = vmul.f32 %v1380, %v1380
  %v1423 = vmul.f32 %v1382, %v1382
  %v1424 = vmul.f32 %v1385, %v1385
  %v1425 = vmul.f32 %v1387, %v1387
  %v1426 = vadd.f32 %v1410, %v1411
  %v1427 = vadd.f32 %v1426, %v1412
  %v1428 = vadd.f32 %v1427, %v1413
  %v1429 = vadd.f32 %v1428, %v1414
  %v1430 = vadd.f32 %v1429, %v1415
  %v1431 = vadd.f32 %v1430, %v1416
  %v1432 = vadd.f32 %v1431, %v1417
  %v1433 = vadd.f32 %v1432, %v1418
  %v1434 = vadd.f32 %v1433, %v1419
  %v1435 = vadd.f32 %v1434, %v1420
  %v1436 = vadd.f32 %v1435, %v1421
  %v1437 = vadd.f32 %v1436, %v1422
  %v1438 = vadd.f32 %v1437, %v1423
  %v1439 = vadd.f32 %v1438, %v1424
  %v1440 = vadd.f32 %v1439, %v1425
  %v1441 = vrot.slane %v1440, 4
  %v1442 = vadd.f32 %v1440, %v1441
  %v1443 = vrot.slane %v1442, 2
  %v1444 = vadd.f32 %v1442, %v1443
  %v1445 = vrot.slane %v1444, 1
  %v1446 = vadd.f32 %v1444, %v1445
  %v1447 = vmul.f32 %v1409, 0.0078125
  %v1448 = vmul.f32 %v1446, 0.0078125
  %v1449 = vmul.f32 %v1447, %v1447
  %v1450 = vsub.f32 %v1448, %v1449
  %v1451 = vmax.f32 %v1450, 0.0
  %v1452 = vld [vmem:[%s5] sm:$0x1]
  %v1453 = vadd.f32 %v1451, 1e-05
  %v1454 = vrsqrt.pop %v1453
  %v1455 = vmul.f32 %v1454, %v1453
  %v1456 = vmul.f32 %v1455, %v1454
  %v1457 = vmul.f32 0.5, %v1456
  %v1458 = vsub.f32 1.5, %v1457
  %v1459 = vmul.f32 %v1454, %v1458
  %vm1460 = vweird.f32 %v1453
  %vm1461 = vweird.f32 %v1454
  %vm1462 = vmor %vm1460, %vm1461
  %v1463 = vsel %vm1462, %v1454, %v1459
  %v1464 = vmul.f32 %v1452, %v1463
  %v1465 = vld [vmem:[%s6] sm:$0x1]
  %v1466 = vmul.f32 %v1447, %v1464
  %v1467 = vsub.f32 %v1465, %v1466
  %v1469 = vperm.slane %v1464, 0
  %v1471 = vmul.f32 %v1350, %v1469
  %v1472 = vmul.f32 %v1352, %v1469
  %v1473 = vmul.f32 %v1355, %v1469
  %v1474 = vmul.f32 %v1357, %v1469
  %v1475 = vmul.f32 %v1360, %v1469
  %v1476 = vmul.f32 %v1362, %v1469
  %v1477 = vmul.f32 %v1365, %v1469
  %v1478 = vmul.f32 %v1367, %v1469
  %v1479 = vmul.f32 %v1370, %v1469
  %v1480 = vmul.f32 %v1372, %v1469
  %v1481 = vmul.f32 %v1375, %v1469
  %v1482 = vmul.f32 %v1377, %v1469
  %v1483 = vmul.f32 %v1380, %v1469
  %v1484 = vmul.f32 %v1382, %v1469
  %v1485 = vmul.f32 %v1385, %v1469
  %v1486 = vmul.f32 %v1387, %v1469
  %v1488 = vperm.slane %v1467, 0
  %v1490 = vadd.f32 %v1471, %v1488
  %v1491 = vadd.f32 %v1472, %v1488
  %v1492 = vadd.f32 %v1473, %v1488
  %v1493 = vadd.f32 %v1474, %v1488
  %v1494 = vadd.f32 %v1475, %v1488
  %v1495 = vadd.f32 %v1476, %v1488
  %v1496 = vadd.f32 %v1477, %v1488
  %v1497 = vadd.f32 %v1478, %v1488
  %v1498 = vadd.f32 %v1479, %v1488
  %v1499 = vadd.f32 %v1480, %v1488
  %v1500 = vadd.f32 %v1481, %v1488
  %v1501 = vadd.f32 %v1482, %v1488
  %v1502 = vadd.f32 %v1483, %v1488
  %v1503 = vadd.f32 %v1484, %v1488
  %v1504 = vadd.f32 %v1485, %v1488
  %v1505 = vadd.f32 %v1486, %v1488
  %vm1506 = vcmp.ge.f32.partialorder %v1490, 0.0
  %vm1507 = vcmp.ge.f32.partialorder %v1491, 0.0
  %vm1508 = vcmp.ge.f32.partialorder %v1492, 0.0
  %vm1509 = vcmp.ge.f32.partialorder %v1493, 0.0
  %vm1510 = vcmp.ge.f32.partialorder %v1494, 0.0
  %vm1511 = vcmp.ge.f32.partialorder %v1495, 0.0
  %vm1512 = vcmp.ge.f32.partialorder %v1496, 0.0
  %vm1513 = vcmp.ge.f32.partialorder %v1497, 0.0
  %vm1514 = vcmp.ge.f32.partialorder %v1498, 0.0
  %vm1515 = vcmp.ge.f32.partialorder %v1499, 0.0
  %vm1516 = vcmp.ge.f32.partialorder %v1500, 0.0
  %vm1517 = vcmp.ge.f32.partialorder %v1501, 0.0
  %vm1518 = vcmp.ge.f32.partialorder %v1502, 0.0
  %vm1519 = vcmp.ge.f32.partialorder %v1503, 0.0
  %vm1520 = vcmp.ge.f32.partialorder %v1504, 0.0
  %vm1521 = vcmp.ge.f32.partialorder %v1505, 0.0
  %v1522 = vmul.f32 %v1490, 0.1
  %v1523 = vmul.f32 %v1491, 0.1
  %v1524 = vmul.f32 %v1492, 0.1
  %v1525 = vmul.f32 %v1493, 0.1
  %v1526 = vmul.f32 %v1494, 0.1
  %v1527 = vmul.f32 %v1495, 0.1
  %v1528 = vmul.f32 %v1496, 0.1
  %v1529 = vmul.f32 %v1497, 0.1
  %v1530 = vmul.f32 %v1498, 0.1
  %v1531 = vmul.f32 %v1499, 0.1
  %v1532 = vmul.f32 %v1500, 0.1
  %v1533 = vmul.f32 %v1501, 0.1
  %v1534 = vmul.f32 %v1502, 0.1
  %v1535 = vmul.f32 %v1503, 0.1
  %v1536 = vmul.f32 %v1504, 0.1
  %v1537 = vmul.f32 %v1505, 0.1
  %v1538 = vsel %vm1506, %v1490, %v1522
  %v1539 = vsel %vm1507, %v1491, %v1523
  %v1540 = vsel %vm1508, %v1492, %v1524
  %v1541 = vsel %vm1509, %v1493, %v1525
  %v1542 = vsel %vm1510, %v1494, %v1526
  %v1543 = vsel %vm1511, %v1495, %v1527
  %v1544 = vsel %vm1512, %v1496, %v1528
  %v1545 = vsel %vm1513, %v1497, %v1529
  %v1546 = vsel %vm1514, %v1498, %v1530
  %v1547 = vsel %vm1515, %v1499, %v1531
  %v1548 = vsel %vm1516, %v1500, %v1532
  %v1549 = vsel %vm1517, %v1501, %v1533
  %v1550 = vsel %vm1518, %v1502, %v1534
  %v1551 = vsel %vm1519, %v1503, %v1535
  %v1552 = vsel %vm1520, %v1504, %v1536
  %v1553 = vsel %vm1521, %v1505, %v1537
  %v1554 = vld [vmem:[%s7] sm:$0x3]
  %1555 = vmatpush.msra.mxu0 %v1553
  %1556 = vmatpush.msra.mxu0 %v1552
  %1557 = vmatpush.msra.mxu0 %v1551
  %1558 = vmatpush.msra.mxu0 %v1550
  %1559 = vmatpush.msra.mxu0 %v1549
  %1560 = vmatpush.msra.mxu0 %v1548
  %1561 = vmatpush.msra.mxu0 %v1547
  %1562 = vmatpush.msra.mxu0 %v1546
  %1563 = vmatpush.msra.mxu0 %v1545
  %1564 = vmatpush.msra.mxu0 %v1544
  %1565 = vmatpush.msra.mxu0 %v1543
  %1566 = vmatpush.msra.mxu0 %v1542
  %1567 = vmatpush.msra.mxu0 %v1541
  %1568 = vmatpush.msra.mxu0 %v1540
  %1569 = vmatpush.msra.mxu0 %v1539
  %1570 = vmatpush.msra.mxu0 %v1538
  %1571 = vmatmul.f32.gmra.mxu0 %v1554
  %v1572 = vpop.f32.mrf.mxu0
  %v1573 = vadd.f32 0.0, %v1572
  %1574 = vdwg.mxu0
  %v1575 = vld [vmem:[%s8] sm:$0x1]
  %v1577 = vperm.slane %v1575, 0
  %v1579 = vmul.f32 %v1573, %v1577
  %vm1580 = vcmask 1041408
  %v1581 = vsel %vm1580, %v1579, 0.0
  %1582 = vadd.xlane.f32.xlu0 %v1581
  %v1583 = vpop.xlane.xlu0 %1582
  %v1584 = vld [vmem:[#allocation2] sm:$0x1]
  %v1586 = vperm.slane %v1584, 0
  %v1588 = vadd.f32 %v1583, %v1586
  %vm1589 = vcmask 1024
  %1590 = vst.msk [vmem:[%s10] sm:$0x3] %vm1589, %v1588
  // Predicated region
  $region42: #{deep_image_forward.1} parent=0 // pred_check
    _
  $region43: #{deep_image_forward.1} parent=0 // pred_check_branch
    %1592 = sbr.rel (0) target = $region45
  $region44: #{deep_image_forward.1} parent=0 // pred_region
    _
  $region45: #{deep_image_forward.1} parent=0 // pred_fallthru
    _
  // Predicated region
  $region46: #{deep_image_forward.1} parent=0 // pred_check
    _
  $region47: #{deep_image_forward.1} parent=0 // pred_check_branch
    %1594 = sbr.rel (0) target = $region49
  $region48: #{deep_image_forward.1} parent=0 // pred_region
    _
  $region49: #{deep_image_forward.1} parent=0 // pred_fallthru
    _

</llo_original>
